<compile_context>
chip_gen: v7x
topology: tpu7x:2x2x1
jax: 0.10.0
libtpu: 0.0.40
codegen_flags: <defaults>
</compile_context>

<pallas_src>
import functools

import jax
import jax.numpy as jnp
from jax.experimental import pallas as pl
from jax.experimental.pallas import tpu as pltpu


def _dueling_kernel(s_ref,
                    we1_ref, be1_ref, we2_ref, be2_ref,
                    wav1_ref, bav1_ref,
                    wa2_ref, ba2_ref, wa3_ref, ba3_ref,
                    wv2_ref, bv2_ref, wv3_ref, bv3_ref,
                    out_ref, *, action_dim):
    """Fused dueling-critic forward for one batch tile.

    Output slab layout (lane-dense, width Lout = multiple of 128):
      out[:, :action_dim]   = advantage(state)
      out[:, action_dim]    = V(state)
      out[:, action_dim+1:] = 0 (padding so the store is a full 128-lane vst)
    """
    def mm(x, w_ref):
        # MXU path: bf16 x bf16 -> f32 accumulation.
        return jnp.dot(x.astype(jnp.bfloat16), w_ref[...],
                       preferred_element_type=jnp.float32)

    x = s_ref[...]

    # Embedding MLP: S -> H -> H (ReLU). Bias-add / ReLU in f32 on the VPU.
    e = jnp.maximum(mm(x, we1_ref) + be1_ref[...], 0.0)
    e = jnp.maximum(mm(e, we2_ref) + be2_ref[...], 0.0)

    # Fused first hidden layer of the advantage + V streams: one H -> 2H matmul,
    # then a static split at column H.
    h = wa2_ref.shape[0]
    av = jnp.maximum(mm(e, wav1_ref) + bav1_ref[...], 0.0)
    a = av[:, :h]
    v = av[:, h:]

    a = jnp.maximum(mm(a, wa2_ref) + ba2_ref[...], 0.0)
    v = jnp.maximum(mm(v, wv2_ref) + bv2_ref[...], 0.0)

    # Advantage output head, padded to Lout lanes (zero weight/bias beyond A).
    adv_full = mm(a, wa3_ref) + ba3_ref[...]                     # (tb, Lout)

    # V head (H -> 1): VPU multiply + XLU lane reduce (all f32, v5e-safe);
    # the scalar bias lives in SMEM.
    v_col = (jnp.sum(v * wv3_ref[...], axis=-1, keepdims=True)
             + bv3_ref[0])                                        # (tb, 1)

    lout = out_ref.shape[-1]
    v_mask = (jax.lax.broadcasted_iota(jnp.int32, (1, lout), 1)
              == action_dim).astype(jnp.float32)
    # Column `action_dim` of adv_full is exactly zero (padded weights), so one
    # wide unmasked store carries both the advantage vector and V.
    out_ref[...] = adv_full + v_col * v_mask


def _pick_vmem_limit_bytes():
    """Generation-aware scoped-VMEM budget (conservative on v7x's 64 MiB)."""
    try:
        cap = int(getattr(pltpu.get_tpu_info(), "vmem_capacity_bytes"))
    except Exception:
        cap = 64 * 1024 * 1024
    # 128 MiB parts (v5e/v6e) -> 64 MiB budget; 64 MiB parts (v7x) -> 32 MiB.
    return int(min(96 * 2 ** 20, max(32 * 2 ** 20, cap // 2)))


def dueling_q_forward(state, params, *, block_b=2048):
    """Q(state, .) over the discrete action set.

    state : (B, S) f32  ->  (Q: (B, A) f32, hc: None)
    """
    (we1, be1, we2, be2,
     wa1, ba1, wa2, ba2, wa3, ba3,
     wv1, bv1, wv2, bv2, wv3_row, bv3) = params

    B, S = state.shape
    H = we1.shape[1]
    A = wa3.shape[1]
    # Lane-dense output width: advantage in cols [0:A], V in col A, zero pad.
    Lout = ((A + 1 + 127) // 128) * 128

    bf16 = jnp.bfloat16
    f32 = jnp.float32

    # MXU weights in bf16 (f32 accumulation in the kernel); biases stay f32.
    we1_b = we1.astype(bf16)
    we2_b = we2.astype(bf16)
    wa2_b = wa2.astype(bf16)
    wv2_b = wv2.astype(bf16)
    # Fuse the first hidden layers of the advantage and V streams.
    wav1_b = jnp.concatenate([wa1, wv1], axis=1).astype(bf16)      # (H, 2H)
    bav1 = jnp.concatenate([ba1, bv1], axis=1).astype(f32)         # (1, 2H)
    # Advantage out head padded to Lout columns (zeros beyond A).
    wa3_p = jnp.zeros((H, Lout), bf16).at[:, :A].set(wa3.astype(bf16))
    ba3_p = jnp.zeros((1, Lout), f32).at[:, :A].set(ba3.astype(f32))
    wv3_f = wv3_row.astype(f32)                                    # (1, H) VPU path
    bv3_s = bv3.astype(f32).reshape((1,))                          # SMEM scalar

    # Batch tiling: sublane-aligned, large enough to amortize the ~0.35 us
    # per-grid-step overhead, and >= 2 tiles whenever the batch allows it so
    # the "parallel" batch axis can shard across v7x's two TensorCores.
    b_aligned = ((B + 7) // 8) * 8
    tb = max(8, (min(block_b, b_aligned) // 8) * 8)
    if b_aligned >= 16 and -(-b_aligned // tb) < 2:
        tb = max(8, ((b_aligned // 2) // 8) * 8)
    b_pad = -(-B // tb) * tb
    if b_pad != B:
        state = jnp.pad(state, ((0, b_pad - B), (0, 0)))
    num_tiles = b_pad // tb

    flops = 2 * b_pad * (S * H + 5 * H * H + H * Lout + H)
    bytes_accessed = (4 * b_pad * (S + Lout)
                      + 2 * int(we1_b.size + we2_b.size + wav1_b.size
                                + wa2_b.size + wv2_b.size + wa3_p.size)
                      + 4 * int(be1.size + be2.size + bav1.size + ba2.size
                                + bv2.size + ba3_p.size + wv3_f.size + bv3_s.size))

    args = (state, we1_b, be1, we2_b, be2, wav1_b, bav1,
            wa2_b, ba2, wa3_p, ba3_p, wv2_b, bv2, wv3_f, bv3_s)

    def run(weight_pipeline_mode):
        def const_spec(arr):
            # Constant block index -> weights stay VMEM-resident, never re-DMA'd.
            nd = arr.ndim
            return pl.BlockSpec(arr.shape, lambda i, _n=nd: (0,) * _n,
                                pipeline_mode=weight_pipeline_mode)

        grid_spec = pltpu.PrefetchScalarGridSpec(
            num_scalar_prefetch=0,
            grid=(num_tiles,),
            in_specs=[
                pl.BlockSpec((tb, S), lambda i: (i, 0)),
                const_spec(we1_b), const_spec(be1),
                const_spec(we2_b), const_spec(be2),
                const_spec(wav1_b), const_spec(bav1),
                const_spec(wa2_b), const_spec(ba2),
                const_spec(wa3_p), const_spec(ba3_p),
                const_spec(wv2_b), const_spec(bv2),
                const_spec(wv3_f),
                pl.BlockSpec(memory_space=pltpu.MemorySpace.SMEM),  # bv3 scalar
            ],
            out_specs=pl.BlockSpec((tb, Lout), lambda i: (i, 0)),
        )

        out = pl.pallas_call(
            functools.partial(_dueling_kernel, action_dim=A),
            out_shape=jax.ShapeDtypeStruct((b_pad, Lout), f32),
            grid_spec=grid_spec,
            compiler_params=pltpu.CompilerParams(
                dimension_semantics=("parallel",),
                vmem_limit_bytes=_pick_vmem_limit_bytes(),
            ),
            cost_estimate=pl.CostEstimate(flops=flops, transcendentals=0,
                                          bytes_accessed=bytes_accessed),
        )(*args)
        return jax.block_until_ready(out)

    try:
        # Weights never change block index -> single-buffer them (halves their
        # VMEM footprint; matters on v7x when H scales up).
        out = run(pl.Buffered(1))
    except Exception:
        # TODO(synk): fall back to default double-buffering if this Pallas
        # version rejects single-buffered (Buffered(1)) weight BlockSpecs.
        out = run(None)

    adv = out[:B, :A]
    v = out[:B, A:A + 1]
    # Dueling combine with the reference's GLOBAL `advantage.mean()` (it couples
    # all batch tiles, so it lives in the wrapper, not the batch-parallel kernel).
    q = v + adv - jnp.mean(adv)
    # hc (recurrent hidden state) has no meaning for the feedforward approximator.
    return q, None


def init_params(key, state_dim, action_dim, hidden=256):
    """PyTorch-default-style (uniform fan-in) init for all eight linear layers."""
    def linear(k, fan_in, fan_out):
        kw, kb = jax.random.split(k)
        bound = 1.0 / float(fan_in) ** 0.5
        w = jax.random.uniform(kw, (fan_in, fan_out), jnp.float32, -bound, bound)
        b = jax.random.uniform(kb, (1, fan_out), jnp.float32, -bound, bound)
        return w, b

    keys = jax.random.split(key, 8)
    we1, be1 = linear(keys[0], state_dim, hidden)
    we2, be2 = linear(keys[1], hidden, hidden)
    wa1, ba1 = linear(keys[2], hidden, hidden)
    wa2, ba2 = linear(keys[3], hidden, hidden)
    wa3, ba3 = linear(keys[4], hidden, action_dim)
    wv1, bv1 = linear(keys[5], hidden, hidden)
    wv2, bv2 = linear(keys[6], hidden, hidden)
    wv3, bv3 = linear(keys[7], hidden, 1)
    wv3_row = wv3.T                      # (1, hidden) row for the VPU V-head
    bv3_scalar = bv3.reshape((1,))       # scalar bias, lives in SMEM
    return (we1, be1, we2, be2, wa1, ba1, wa2, ba2, wa3, ba3,
            wv1, bv1, wv2, bv2, wv3_row, bv3_scalar)


def _reference(state, params):
    """Pure-JAX reference with the same bf16-matmul / f32-accumulate precision."""
    (we1, be1, we2, be2, wa1, ba1, wa2, ba2, wa3, ba3,
     wv1, bv1, wv2, bv2, wv3_row, bv3) = params

    def mm(x, w):
        return jnp.dot(x.astype(jnp.bfloat16), w.astype(jnp.bfloat16),
                       preferred_element_type=jnp.float32)

    e = jnp.maximum(mm(state, we1) + be1, 0.0)
    e = jnp.maximum(mm(e, we2) + be2, 0.0)
    a = jnp.maximum(mm(e, wa1) + ba1, 0.0)
    a = jnp.maximum(mm(a, wa2) + ba2, 0.0)
    adv = mm(a, wa3) + ba3
    v = jnp.maximum(mm(e, wv1) + bv1, 0.0)
    v = jnp.maximum(mm(v, wv2) + bv2, 0.0)
    v = jnp.sum(v * wv3_row, axis=-1, keepdims=True) + bv3.reshape(1, 1)
    return v + adv - jnp.mean(adv)


if __name__ == "__main__":
    B, STATE_DIM, ACTION_DIM, HIDDEN = 2, 8, 4, 32

    key = jax.random.PRNGKey(0)
    k_s, k_p = jax.random.split(key)
    state = jax.random.normal(k_s, (B, STATE_DIM), jnp.float32)
    params = init_params(k_p, STATE_DIM, ACTION_DIM, HIDDEN)

    q, hc = dueling_q_forward(state, params)
    q = jax.block_until_ready(q)

    q_ref = _reference(state, params)
    assert q.shape == (B, ACTION_DIM), q.shape
    assert hc is None
    assert jnp.allclose(q, q_ref, atol=2e-3, rtol=2e-3), (q, q_ref)

    print("KERNEL_OK")
</pallas_src>

<mosaic_0001>
module attributes {stable_mosaic.version = 11 : i64} {
  func.func @_dueling_kernel(%arg0: i32, %arg1: memref<8x8xf32, #tpu.memory_space<vmem>>, %arg2: memref<8x32xbf16, #tpu.memory_space<vmem>>, %arg3: memref<1x32xf32, #tpu.memory_space<vmem>>, %arg4: memref<32x32xbf16, #tpu.memory_space<vmem>>, %arg5: memref<1x32xf32, #tpu.memory_space<vmem>>, %arg6: memref<32x64xbf16, #tpu.memory_space<vmem>>, %arg7: memref<1x64xf32, #tpu.memory_space<vmem>>, %arg8: memref<32x32xbf16, #tpu.memory_space<vmem>>, %arg9: memref<1x32xf32, #tpu.memory_space<vmem>>, %arg10: memref<32x128xbf16, #tpu.memory_space<vmem>>, %arg11: memref<1x128xf32, #tpu.memory_space<vmem>>, %arg12: memref<32x32xbf16, #tpu.memory_space<vmem>>, %arg13: memref<1x32xf32, #tpu.memory_space<vmem>>, %arg14: memref<1x32xf32, #tpu.memory_space<vmem>>, %arg15: memref<1xf32, #tpu.memory_space<smem>>, %arg16: memref<8x128xf32, #tpu.memory_space<vmem>>) attributes {dimension_semantics = [#tpu.dimension_semantics<parallel>], iteration_bounds = array<i64: 1>, scalar_prefetch = 0 : i64, scratch_operands = 0 : i64, tpu.core_type = #tpu.core_type<tc>, window_params = [{transform_indices = @transform_0, window_bounds = array<i64: 8, 8>}, {pipeline_mode = #tpu.pipeline_mode<synchronous>, transform_indices = @transform_1, window_bounds = array<i64: 8, 32>}, {pipeline_mode = #tpu.pipeline_mode<synchronous>, transform_indices = @transform_2, window_bounds = array<i64: 1, 32>}, {pipeline_mode = #tpu.pipeline_mode<synchronous>, transform_indices = @transform_3, window_bounds = array<i64: 32, 32>}, {pipeline_mode = #tpu.pipeline_mode<synchronous>, transform_indices = @transform_4, window_bounds = array<i64: 1, 32>}, {pipeline_mode = #tpu.pipeline_mode<synchronous>, transform_indices = @transform_5, window_bounds = array<i64: 32, 64>}, {pipeline_mode = #tpu.pipeline_mode<synchronous>, transform_indices = @transform_6, window_bounds = array<i64: 1, 64>}, {pipeline_mode = #tpu.pipeline_mode<synchronous>, transform_indices = @transform_7, window_bounds = array<i64: 32, 32>}, {pipeline_mode = #tpu.pipeline_mode<synchronous>, transform_indices = @transform_8, window_bounds = array<i64: 1, 32>}, {pipeline_mode = #tpu.pipeline_mode<synchronous>, transform_indices = @transform_9, window_bounds = array<i64: 32, 128>}, {pipeline_mode = #tpu.pipeline_mode<synchronous>, transform_indices = @transform_10, window_bounds = array<i64: 1, 128>}, {pipeline_mode = #tpu.pipeline_mode<synchronous>, transform_indices = @transform_11, window_bounds = array<i64: 32, 32>}, {pipeline_mode = #tpu.pipeline_mode<synchronous>, transform_indices = @transform_12, window_bounds = array<i64: 1, 32>}, {pipeline_mode = #tpu.pipeline_mode<synchronous>, transform_indices = @transform_13, window_bounds = array<i64: 1, 32>}, {transform_indices = @transform_14, window_bounds = array<i64: 1>}, {transform_indices = @transform_15, window_bounds = array<i64: 8, 128>}]} {
    %c0 = arith.constant 0 : index
    %c0_0 = arith.constant 0 : index
    %0 = vector.load %arg1[%c0, %c0_0] : memref<8x8xf32, #tpu.memory_space<vmem>>, vector<8x8xf32>
    %1 = arith.truncf %0 : vector<8x8xf32> to vector<8x8xbf16>
    %c0_1 = arith.constant 0 : index
    %c0_2 = arith.constant 0 : index
    %2 = vector.load %arg2[%c0_1, %c0_2] : memref<8x32xbf16, #tpu.memory_space<vmem>>, vector<8x32xbf16>
    %cst = arith.constant dense<0.000000e+00> : vector<8x32xf32>
    %3 = tpu.matmul %1, %2, %cst {dimension_numbers = #tpu.dot_dimension_numbers<[1], [0], [0], [1], [0, 0, 1, 1], [], []>} : vector<8x8xbf16>, vector<8x32xbf16>, vector<8x32xf32> -> vector<8x32xf32>
    %c0_3 = arith.constant 0 : index
    %c0_4 = arith.constant 0 : index
    %4 = vector.load %arg3[%c0_3, %c0_4] : memref<1x32xf32, #tpu.memory_space<vmem>>, vector<1x32xf32>
    %5 = vector.broadcast %4 : vector<1x32xf32> to vector<8x32xf32>
    %6 = arith.addf %3, %5 : vector<8x32xf32>
    %cst_5 = arith.constant 0.000000e+00 : f32
    %7 = vector.broadcast %cst_5 : f32 to vector<8x32xf32>
    %8 = arith.maximumf %6, %7 : vector<8x32xf32>
    %9 = arith.truncf %8 : vector<8x32xf32> to vector<8x32xbf16>
    %c0_6 = arith.constant 0 : index
    %c0_7 = arith.constant 0 : index
    %10 = vector.load %arg4[%c0_6, %c0_7] : memref<32x32xbf16, #tpu.memory_space<vmem>>, vector<32x32xbf16>
    %cst_8 = arith.constant dense<0.000000e+00> : vector<8x32xf32>
    %11 = tpu.matmul %9, %10, %cst_8 {dimension_numbers = #tpu.dot_dimension_numbers<[1], [0], [0], [1], [0, 0, 1, 1], [], []>} : vector<8x32xbf16>, vector<32x32xbf16>, vector<8x32xf32> -> vector<8x32xf32>
    %c0_9 = arith.constant 0 : index
    %c0_10 = arith.constant 0 : index
    %12 = vector.load %arg5[%c0_9, %c0_10] : memref<1x32xf32, #tpu.memory_space<vmem>>, vector<1x32xf32>
    %13 = vector.broadcast %12 : vector<1x32xf32> to vector<8x32xf32>
    %14 = arith.addf %11, %13 : vector<8x32xf32>
    %cst_11 = arith.constant 0.000000e+00 : f32
    %15 = vector.broadcast %cst_11 : f32 to vector<8x32xf32>
    %16 = arith.maximumf %14, %15 : vector<8x32xf32>
    %17 = arith.truncf %16 : vector<8x32xf32> to vector<8x32xbf16>
    %c0_12 = arith.constant 0 : index
    %c0_13 = arith.constant 0 : index
    %18 = vector.load %arg6[%c0_12, %c0_13] : memref<32x64xbf16, #tpu.memory_space<vmem>>, vector<32x64xbf16>
    %cst_14 = arith.constant dense<0.000000e+00> : vector<8x64xf32>
    %19 = tpu.matmul %17, %18, %cst_14 {dimension_numbers = #tpu.dot_dimension_numbers<[1], [0], [0], [1], [0, 0, 1, 1], [], []>} : vector<8x32xbf16>, vector<32x64xbf16>, vector<8x64xf32> -> vector<8x64xf32>
    %c0_15 = arith.constant 0 : index
    %c0_16 = arith.constant 0 : index
    %20 = vector.load %arg7[%c0_15, %c0_16] : memref<1x64xf32, #tpu.memory_space<vmem>>, vector<1x64xf32>
    %21 = vector.broadcast %20 : vector<1x64xf32> to vector<8x64xf32>
    %22 = arith.addf %19, %21 : vector<8x64xf32>
    %cst_17 = arith.constant 0.000000e+00 : f32
    %23 = vector.broadcast %cst_17 : f32 to vector<8x64xf32>
    %24 = arith.maximumf %22, %23 : vector<8x64xf32>
    %25 = vector.extract_strided_slice %24 {offsets = [0, 0], sizes = [8, 32], strides = [1, 1]} : vector<8x64xf32> to vector<8x32xf32>
    %26 = vector.extract_strided_slice %24 {offsets = [0, 32], sizes = [8, 32], strides = [1, 1]} : vector<8x64xf32> to vector<8x32xf32>
    %27 = arith.truncf %25 : vector<8x32xf32> to vector<8x32xbf16>
    %c0_18 = arith.constant 0 : index
    %c0_19 = arith.constant 0 : index
    %28 = vector.load %arg8[%c0_18, %c0_19] : memref<32x32xbf16, #tpu.memory_space<vmem>>, vector<32x32xbf16>
    %cst_20 = arith.constant dense<0.000000e+00> : vector<8x32xf32>
    %29 = tpu.matmul %27, %28, %cst_20 {dimension_numbers = #tpu.dot_dimension_numbers<[1], [0], [0], [1], [0, 0, 1, 1], [], []>} : vector<8x32xbf16>, vector<32x32xbf16>, vector<8x32xf32> -> vector<8x32xf32>
    %c0_21 = arith.constant 0 : index
    %c0_22 = arith.constant 0 : index
    %30 = vector.load %arg9[%c0_21, %c0_22] : memref<1x32xf32, #tpu.memory_space<vmem>>, vector<1x32xf32>
    %31 = vector.broadcast %30 : vector<1x32xf32> to vector<8x32xf32>
    %32 = arith.addf %29, %31 : vector<8x32xf32>
    %cst_23 = arith.constant 0.000000e+00 : f32
    %33 = vector.broadcast %cst_23 : f32 to vector<8x32xf32>
    %34 = arith.maximumf %32, %33 : vector<8x32xf32>
    %35 = arith.truncf %26 : vector<8x32xf32> to vector<8x32xbf16>
    %c0_24 = arith.constant 0 : index
    %c0_25 = arith.constant 0 : index
    %36 = vector.load %arg12[%c0_24, %c0_25] : memref<32x32xbf16, #tpu.memory_space<vmem>>, vector<32x32xbf16>
    %cst_26 = arith.constant dense<0.000000e+00> : vector<8x32xf32>
    %37 = tpu.matmul %35, %36, %cst_26 {dimension_numbers = #tpu.dot_dimension_numbers<[1], [0], [0], [1], [0, 0, 1, 1], [], []>} : vector<8x32xbf16>, vector<32x32xbf16>, vector<8x32xf32> -> vector<8x32xf32>
    %c0_27 = arith.constant 0 : index
    %c0_28 = arith.constant 0 : index
    %38 = vector.load %arg13[%c0_27, %c0_28] : memref<1x32xf32, #tpu.memory_space<vmem>>, vector<1x32xf32>
    %39 = vector.broadcast %38 : vector<1x32xf32> to vector<8x32xf32>
    %40 = arith.addf %37, %39 : vector<8x32xf32>
    %cst_29 = arith.constant 0.000000e+00 : f32
    %41 = vector.broadcast %cst_29 : f32 to vector<8x32xf32>
    %42 = arith.maximumf %40, %41 : vector<8x32xf32>
    %43 = arith.truncf %34 : vector<8x32xf32> to vector<8x32xbf16>
    %c0_30 = arith.constant 0 : index
    %c0_31 = arith.constant 0 : index
    %44 = vector.load %arg10[%c0_30, %c0_31] : memref<32x128xbf16, #tpu.memory_space<vmem>>, vector<32x128xbf16>
    %cst_32 = arith.constant dense<0.000000e+00> : vector<8x128xf32>
    %45 = tpu.matmul %43, %44, %cst_32 {dimension_numbers = #tpu.dot_dimension_numbers<[1], [0], [0], [1], [0, 0, 1, 1], [], []>} : vector<8x32xbf16>, vector<32x128xbf16>, vector<8x128xf32> -> vector<8x128xf32>
    %c0_33 = arith.constant 0 : index
    %c0_34 = arith.constant 0 : index
    %46 = vector.load %arg11[%c0_33, %c0_34] : memref<1x128xf32, #tpu.memory_space<vmem>>, vector<1x128xf32>
    %47 = vector.broadcast %46 : vector<1x128xf32> to vector<8x128xf32>
    %48 = arith.addf %45, %47 : vector<8x128xf32>
    %c0_35 = arith.constant 0 : index
    %c0_36 = arith.constant 0 : index
    %49 = vector.load %arg14[%c0_35, %c0_36] : memref<1x32xf32, #tpu.memory_space<vmem>>, vector<1x32xf32>
    %50 = vector.broadcast %49 : vector<1x32xf32> to vector<8x32xf32>
    %51 = arith.mulf %42, %50 : vector<8x32xf32>
    %cst_37 = arith.constant dense<0.000000e+00> : vector<8xf32>
    %52 = vector.multi_reduction <add>, %51, %cst_37 [1] : vector<8x32xf32> to vector<8xf32>
    %53 = vector.shape_cast %52 : vector<8xf32> to vector<8x1xf32>
    %c0_38 = arith.constant 0 : index
    %54 = memref.load %arg15[%c0_38] : memref<1xf32, #tpu.memory_space<smem>>
    %55 = vector.broadcast %54 : f32 to vector<8x1xf32>
    %56 = arith.addf %53, %55 : vector<8x1xf32>
    %57 = tpu.iota {dimensions = array<i32: 1>} : vector<1x128xi32>
    %c4_i32 = arith.constant 4 : i32
    %58 = vector.broadcast %c4_i32 : i32 to vector<1x128xi32>
    %59 = arith.cmpi eq, %57, %58 : vector<1x128xi32>
    %60 = arith.extui %59 : vector<1x128xi1> to vector<1x128xi32>
    %61 = arith.sitofp %60 : vector<1x128xi32> to vector<1x128xf32>
    %62 = vector.broadcast %56 : vector<8x1xf32> to vector<8x128xf32>
    %63 = vector.broadcast %61 : vector<1x128xf32> to vector<8x128xf32>
    %64 = arith.mulf %62, %63 : vector<8x128xf32>
    %65 = arith.addf %48, %64 : vector<8x128xf32>
    %c0_39 = arith.constant 0 : index
    %c0_40 = arith.constant 0 : index
    %66 = vector.load %arg16[%c0_39, %c0_40] : memref<8x128xf32, #tpu.memory_space<vmem>>, vector<8x128xf32>
    tpu.vector_store %arg16[%c0_39, %c0_40], %65 {strides = array<i32>} : memref<8x128xf32, #tpu.memory_space<vmem>>, vector<8x128xf32>,
    return
  }
  func.func @transform_0(%arg0: i32) -> (i32, i32) {
    %c0_i32 = arith.constant 0 : i32
    %c0_i32_0 = arith.constant 0 : i32
    return %arg0, %c0_i32 : i32, i32
  }
  func.func @transform_1(%arg0: i32) -> (i32, i32) {
    %c0_i32 = arith.constant 0 : i32
    %c0_i32_0 = arith.constant 0 : i32
    %c0_i32_1 = arith.constant 0 : i32
    return %c0_i32, %c0_i32_0 : i32, i32
  }
  func.func @transform_2(%arg0: i32) -> (i32, i32) {
    %c0_i32 = arith.constant 0 : i32
    %c0_i32_0 = arith.constant 0 : i32
    %c0_i32_1 = arith.constant 0 : i32
    return %c0_i32, %c0_i32_0 : i32, i32
  }
  func.func @transform_3(%arg0: i32) -> (i32, i32) {
    %c0_i32 = arith.constant 0 : i32
    %c0_i32_0 = arith.constant 0 : i32
    %c0_i32_1 = arith.constant 0 : i32
    return %c0_i32, %c0_i32_0 : i32, i32
  }
  func.func @transform_4(%arg0: i32) -> (i32, i32) {
    %c0_i32 = arith.constant 0 : i32
    %c0_i32_0 = arith.constant 0 : i32
    %c0_i32_1 = arith.constant 0 : i32
    return %c0_i32, %c0_i32_0 : i32, i32
  }
  func.func @transform_5(%arg0: i32) -> (i32, i32) {
    %c0_i32 = arith.constant 0 : i32
    %c0_i32_0 = arith.constant 0 : i32
    %c0_i32_1 = arith.constant 0 : i32
    return %c0_i32, %c0_i32_0 : i32, i32
  }
  func.func @transform_6(%arg0: i32) -> (i32, i32) {
    %c0_i32 = arith.constant 0 : i32
    %c0_i32_0 = arith.constant 0 : i32
    %c0_i32_1 = arith.constant 0 : i32
    return %c0_i32, %c0_i32_0 : i32, i32
  }
  func.func @transform_7(%arg0: i32) -> (i32, i32) {
    %c0_i32 = arith.constant 0 : i32
    %c0_i32_0 = arith.constant 0 : i32
    %c0_i32_1 = arith.constant 0 : i32
    return %c0_i32, %c0_i32_0 : i32, i32
  }
  func.func @transform_8(%arg0: i32) -> (i32, i32) {
    %c0_i32 = arith.constant 0 : i32
    %c0_i32_0 = arith.constant 0 : i32
    %c0_i32_1 = arith.constant 0 : i32
    return %c0_i32, %c0_i32_0 : i32, i32
  }
  func.func @transform_9(%arg0: i32) -> (i32, i32) {
    %c0_i32 = arith.constant 0 : i32
    %c0_i32_0 = arith.constant 0 : i32
    %c0_i32_1 = arith.constant 0 : i32
    return %c0_i32, %c0_i32_0 : i32, i32
  }
  func.func @transform_10(%arg0: i32) -> (i32, i32) {
    %c0_i32 = arith.constant 0 : i32
    %c0_i32_0 = arith.constant 0 : i32
    %c0_i32_1 = arith.constant 0 : i32
    return %c0_i32, %c0_i32_0 : i32, i32
  }
  func.func @transform_11(%arg0: i32) -> (i32, i32) {
    %c0_i32 = arith.constant 0 : i32
    %c0_i32_0 = arith.constant 0 : i32
    %c0_i32_1 = arith.constant 0 : i32
    return %c0_i32, %c0_i32_0 : i32, i32
  }
  func.func @transform_12(%arg0: i32) -> (i32, i32) {
    %c0_i32 = arith.constant 0 : i32
    %c0_i32_0 = arith.constant 0 : i32
    %c0_i32_1 = arith.constant 0 : i32
    return %c0_i32, %c0_i32_0 : i32, i32
  }
  func.func @transform_13(%arg0: i32) -> (i32, i32) {
    %c0_i32 = arith.constant 0 : i32
    %c0_i32_0 = arith.constant 0 : i32
    %c0_i32_1 = arith.constant 0 : i32
    return %c0_i32, %c0_i32_0 : i32, i32
  }
  func.func @transform_14(%arg0: i32) -> i32 {
    %c0_i32 = arith.constant 0 : i32
    %c0_i32_0 = arith.constant 0 : i32
    return %c0_i32 : i32
  }
  func.func @transform_15(%arg0: i32) -> (i32, i32) {
    %c0_i32 = arith.constant 0 : i32
    %c0_i32_0 = arith.constant 0 : i32
    return %arg0, %c0_i32 : i32, i32
  }
}

module attributes {stable_mosaic.version = 11 : i64} {
  func.func @_dueling_kernel(%arg0: i32, %arg1: memref<8x8xf32, #tpu.memory_space<vmem>>, %arg2: memref<8x32xbf16, #tpu.memory_space<vmem>>, %arg3: memref<1x32xf32, #tpu.memory_space<vmem>>, %arg4: memref<32x32xbf16, #tpu.memory_space<vmem>>, %arg5: memref<1x32xf32, #tpu.memory_space<vmem>>, %arg6: memref<32x64xbf16, #tpu.memory_space<vmem>>, %arg7: memref<1x64xf32, #tpu.memory_space<vmem>>, %arg8: memref<32x32xbf16, #tpu.memory_space<vmem>>, %arg9: memref<1x32xf32, #tpu.memory_space<vmem>>, %arg10: memref<32x128xbf16, #tpu.memory_space<vmem>>, %arg11: memref<1x128xf32, #tpu.memory_space<vmem>>, %arg12: memref<32x32xbf16, #tpu.memory_space<vmem>>, %arg13: memref<1x32xf32, #tpu.memory_space<vmem>>, %arg14: memref<1x32xf32, #tpu.memory_space<vmem>>, %arg15: memref<1xf32, #tpu.memory_space<smem>>, %arg16: memref<8x128xf32, #tpu.memory_space<vmem>>) attributes {dimension_semantics = [#tpu.dimension_semantics<parallel>], iteration_bounds = array<i64: 1>, scalar_prefetch = 0 : i64, scratch_operands = 0 : i64, tpu.core_type = #tpu.core_type<tc>, window_params = [{transform_indices = @transform_0, window_bounds = array<i64: 8, 8>}, {pipeline_mode = #tpu.pipeline_mode<synchronous>, transform_indices = @transform_1, window_bounds = array<i64: 8, 32>}, {pipeline_mode = #tpu.pipeline_mode<synchronous>, transform_indices = @transform_2, window_bounds = array<i64: 1, 32>}, {pipeline_mode = #tpu.pipeline_mode<synchronous>, transform_indices = @transform_3, window_bounds = array<i64: 32, 32>}, {pipeline_mode = #tpu.pipeline_mode<synchronous>, transform_indices = @transform_4, window_bounds = array<i64: 1, 32>}, {pipeline_mode = #tpu.pipeline_mode<synchronous>, transform_indices = @transform_5, window_bounds = array<i64: 32, 64>}, {pipeline_mode = #tpu.pipeline_mode<synchronous>, transform_indices = @transform_6, window_bounds = array<i64: 1, 64>}, {pipeline_mode = #tpu.pipeline_mode<synchronous>, transform_indices = @transform_7, window_bounds = array<i64: 32, 32>}, {pipeline_mode = #tpu.pipeline_mode<synchronous>, transform_indices = @transform_8, window_bounds = array<i64: 1, 32>}, {pipeline_mode = #tpu.pipeline_mode<synchronous>, transform_indices = @transform_9, window_bounds = array<i64: 32, 128>}, {pipeline_mode = #tpu.pipeline_mode<synchronous>, transform_indices = @transform_10, window_bounds = array<i64: 1, 128>}, {pipeline_mode = #tpu.pipeline_mode<synchronous>, transform_indices = @transform_11, window_bounds = array<i64: 32, 32>}, {pipeline_mode = #tpu.pipeline_mode<synchronous>, transform_indices = @transform_12, window_bounds = array<i64: 1, 32>}, {pipeline_mode = #tpu.pipeline_mode<synchronous>, transform_indices = @transform_13, window_bounds = array<i64: 1, 32>}, {transform_indices = @transform_14, window_bounds = array<i64: 1>}, {transform_indices = @transform_15, window_bounds = array<i64: 8, 128>}]} {
    %c0 = arith.constant 0 : index
    %c0_0 = arith.constant 0 : index
    %0 = vector.load %arg1[%c0, %c0_0] : memref<8x8xf32, #tpu.memory_space<vmem>>, vector<8x8xf32>
    %1 = arith.truncf %0 : vector<8x8xf32> to vector<8x8xbf16>
    %c0_1 = arith.constant 0 : index
    %c0_2 = arith.constant 0 : index
    %2 = vector.load %arg2[%c0_1, %c0_2] : memref<8x32xbf16, #tpu.memory_space<vmem>>, vector<8x32xbf16>
    %cst = arith.constant dense<0.000000e+00> : vector<8x32xf32>
    %3 = tpu.matmul %1, %2, %cst {dimension_numbers = #tpu.dot_dimension_numbers<[1], [0], [0], [1], [0, 0, 1, 1], [], []>} : vector<8x8xbf16>, vector<8x32xbf16>, vector<8x32xf32> -> vector<8x32xf32>
    %c0_3 = arith.constant 0 : index
    %c0_4 = arith.constant 0 : index
    %4 = vector.load %arg3[%c0_3, %c0_4] : memref<1x32xf32, #tpu.memory_space<vmem>>, vector<1x32xf32>
    %5 = vector.broadcast %4 : vector<1x32xf32> to vector<8x32xf32>
    %6 = arith.addf %3, %5 : vector<8x32xf32>
    %cst_5 = arith.constant 0.000000e+00 : f32
    %7 = vector.broadcast %cst_5 : f32 to vector<8x32xf32>
    %8 = arith.maximumf %6, %7 : vector<8x32xf32>
    %9 = arith.truncf %8 : vector<8x32xf32> to vector<8x32xbf16>
    %c0_6 = arith.constant 0 : index
    %c0_7 = arith.constant 0 : index
    %10 = vector.load %arg4[%c0_6, %c0_7] : memref<32x32xbf16, #tpu.memory_space<vmem>>, vector<32x32xbf16>
    %cst_8 = arith.constant dense<0.000000e+00> : vector<8x32xf32>
    %11 = tpu.matmul %9, %10, %cst_8 {dimension_numbers = #tpu.dot_dimension_numbers<[1], [0], [0], [1], [0, 0, 1, 1], [], []>} : vector<8x32xbf16>, vector<32x32xbf16>, vector<8x32xf32> -> vector<8x32xf32>
    %c0_9 = arith.constant 0 : index
    %c0_10 = arith.constant 0 : index
    %12 = vector.load %arg5[%c0_9, %c0_10] : memref<1x32xf32, #tpu.memory_space<vmem>>, vector<1x32xf32>
    %13 = vector.broadcast %12 : vector<1x32xf32> to vector<8x32xf32>
    %14 = arith.addf %11, %13 : vector<8x32xf32>
    %cst_11 = arith.constant 0.000000e+00 : f32
    %15 = vector.broadcast %cst_11 : f32 to vector<8x32xf32>
    %16 = arith.maximumf %14, %15 : vector<8x32xf32>
    %17 = arith.truncf %16 : vector<8x32xf32> to vector<8x32xbf16>
    %c0_12 = arith.constant 0 : index
    %c0_13 = arith.constant 0 : index
    %18 = vector.load %arg6[%c0_12, %c0_13] : memref<32x64xbf16, #tpu.memory_space<vmem>>, vector<32x64xbf16>
    %cst_14 = arith.constant dense<0.000000e+00> : vector<8x64xf32>
    %19 = tpu.matmul %17, %18, %cst_14 {dimension_numbers = #tpu.dot_dimension_numbers<[1], [0], [0], [1], [0, 0, 1, 1], [], []>} : vector<8x32xbf16>, vector<32x64xbf16>, vector<8x64xf32> -> vector<8x64xf32>
    %c0_15 = arith.constant 0 : index
    %c0_16 = arith.constant 0 : index
    %20 = vector.load %arg7[%c0_15, %c0_16] : memref<1x64xf32, #tpu.memory_space<vmem>>, vector<1x64xf32>
    %21 = vector.broadcast %20 : vector<1x64xf32> to vector<8x64xf32>
    %22 = arith.addf %19, %21 : vector<8x64xf32>
    %cst_17 = arith.constant 0.000000e+00 : f32
    %23 = vector.broadcast %cst_17 : f32 to vector<8x64xf32>
    %24 = arith.maximumf %22, %23 : vector<8x64xf32>
    %25 = vector.extract_strided_slice %24 {offsets = [0, 0], sizes = [8, 32], strides = [1, 1]} : vector<8x64xf32> to vector<8x32xf32>
    %26 = vector.extract_strided_slice %24 {offsets = [0, 32], sizes = [8, 32], strides = [1, 1]} : vector<8x64xf32> to vector<8x32xf32>
    %27 = arith.truncf %25 : vector<8x32xf32> to vector<8x32xbf16>
    %c0_18 = arith.constant 0 : index
    %c0_19 = arith.constant 0 : index
    %28 = vector.load %arg8[%c0_18, %c0_19] : memref<32x32xbf16, #tpu.memory_space<vmem>>, vector<32x32xbf16>
    %cst_20 = arith.constant dense<0.000000e+00> : vector<8x32xf32>
    %29 = tpu.matmul %27, %28, %cst_20 {dimension_numbers = #tpu.dot_dimension_numbers<[1], [0], [0], [1], [0, 0, 1, 1], [], []>} : vector<8x32xbf16>, vector<32x32xbf16>, vector<8x32xf32> -> vector<8x32xf32>
    %c0_21 = arith.constant 0 : index
    %c0_22 = arith.constant 0 : index
    %30 = vector.load %arg9[%c0_21, %c0_22] : memref<1x32xf32, #tpu.memory_space<vmem>>, vector<1x32xf32>
    %31 = vector.broadcast %30 : vector<1x32xf32> to vector<8x32xf32>
    %32 = arith.addf %29, %31 : vector<8x32xf32>
    %cst_23 = arith.constant 0.000000e+00 : f32
    %33 = vector.broadcast %cst_23 : f32 to vector<8x32xf32>
    %34 = arith.maximumf %32, %33 : vector<8x32xf32>
    %35 = arith.truncf %26 : vector<8x32xf32> to vector<8x32xbf16>
    %c0_24 = arith.constant 0 : index
    %c0_25 = arith.constant 0 : index
    %36 = vector.load %arg12[%c0_24, %c0_25] : memref<32x32xbf16, #tpu.memory_space<vmem>>, vector<32x32xbf16>
    %cst_26 = arith.constant dense<0.000000e+00> : vector<8x32xf32>
    %37 = tpu.matmul %35, %36, %cst_26 {dimension_numbers = #tpu.dot_dimension_numbers<[1], [0], [0], [1], [0, 0, 1, 1], [], []>} : vector<8x32xbf16>, vector<32x32xbf16>, vector<8x32xf32> -> vector<8x32xf32>
    %c0_27 = arith.constant 0 : index
    %c0_28 = arith.constant 0 : index
    %38 = vector.load %arg13[%c0_27, %c0_28] : memref<1x32xf32, #tpu.memory_space<vmem>>, vector<1x32xf32>
    %39 = vector.broadcast %38 : vector<1x32xf32> to vector<8x32xf32>
    %40 = arith.addf %37, %39 : vector<8x32xf32>
    %cst_29 = arith.constant 0.000000e+00 : f32
    %41 = vector.broadcast %cst_29 : f32 to vector<8x32xf32>
    %42 = arith.maximumf %40, %41 : vector<8x32xf32>
    %43 = arith.truncf %34 : vector<8x32xf32> to vector<8x32xbf16>
    %c0_30 = arith.constant 0 : index
    %c0_31 = arith.constant 0 : index
    %44 = vector.load %arg10[%c0_30, %c0_31] : memref<32x128xbf16, #tpu.memory_space<vmem>>, vector<32x128xbf16>
    %cst_32 = arith.constant dense<0.000000e+00> : vector<8x128xf32>
    %45 = tpu.matmul %43, %44, %cst_32 {dimension_numbers = #tpu.dot_dimension_numbers<[1], [0], [0], [1], [0, 0, 1, 1], [], []>} : vector<8x32xbf16>, vector<32x128xbf16>, vector<8x128xf32> -> vector<8x128xf32>
    %c0_33 = arith.constant 0 : index
    %c0_34 = arith.constant 0 : index
    %46 = vector.load %arg11[%c0_33, %c0_34] : memref<1x128xf32, #tpu.memory_space<vmem>>, vector<1x128xf32>
    %47 = vector.broadcast %46 : vector<1x128xf32> to vector<8x128xf32>
    %48 = arith.addf %45, %47 : vector<8x128xf32>
    %c0_35 = arith.constant 0 : index
    %c0_36 = arith.constant 0 : index
    %49 = vector.load %arg14[%c0_35, %c0_36] : memref<1x32xf32, #tpu.memory_space<vmem>>, vector<1x32xf32>
    %50 = vector.broadcast %49 : vector<1x32xf32> to vector<8x32xf32>
    %51 = arith.mulf %42, %50 : vector<8x32xf32>
    %cst_37 = arith.constant dense<0.000000e+00> : vector<8xf32>
    %52 = vector.multi_reduction <add>, %51, %cst_37 [1] : vector<8x32xf32> to vector<8xf32>
    %53 = vector.shape_cast %52 : vector<8xf32> to vector<8x1xf32>
    %c0_38 = arith.constant 0 : index
    %54 = memref.load %arg15[%c0_38] : memref<1xf32, #tpu.memory_space<smem>>
    %55 = vector.broadcast %54 : f32 to vector<8x1xf32>
    %56 = arith.addf %53, %55 : vector<8x1xf32>
    %57 = tpu.iota {dimensions = array<i32: 1>} : vector<1x128xi32>
    %c4_i32 = arith.constant 4 : i32
    %58 = vector.broadcast %c4_i32 : i32 to vector<1x128xi32>
    %59 = arith.cmpi eq, %57, %58 : vector<1x128xi32>
    %60 = arith.extui %59 : vector<1x128xi1> to vector<1x128xi32>
    %61 = arith.sitofp %60 : vector<1x128xi32> to vector<1x128xf32>
    %62 = vector.broadcast %56 : vector<8x1xf32> to vector<8x128xf32>
    %63 = vector.broadcast %61 : vector<1x128xf32> to vector<8x128xf32>
    %64 = arith.mulf %62, %63 : vector<8x128xf32>
    %65 = arith.addf %48, %64 : vector<8x128xf32>
    %c0_39 = arith.constant 0 : index
    %c0_40 = arith.constant 0 : index
    %66 = vector.load %arg16[%c0_39, %c0_40] : memref<8x128xf32, #tpu.memory_space<vmem>>, vector<8x128xf32>
    tpu.vector_store %arg16[%c0_39, %c0_40], %65 {strides = array<i32>} : memref<8x128xf32, #tpu.memory_space<vmem>>, vector<8x128xf32>,
    return
  }
  func.func @transform_0(%arg0: i32) -> (i32, i32) {
    %c0_i32 = arith.constant 0 : i32
    %c0_i32_0 = arith.constant 0 : i32
    return %arg0, %c0_i32 : i32, i32
  }
  func.func @transform_1(%arg0: i32) -> (i32, i32) {
    %c0_i32 = arith.constant 0 : i32
    %c0_i32_0 = arith.constant 0 : i32
    %c0_i32_1 = arith.constant 0 : i32
    return %c0_i32, %c0_i32_0 : i32, i32
  }
  func.func @transform_2(%arg0: i32) -> (i32, i32) {
    %c0_i32 = arith.constant 0 : i32
    %c0_i32_0 = arith.constant 0 : i32
    %c0_i32_1 = arith.constant 0 : i32
    return %c0_i32, %c0_i32_0 : i32, i32
  }
  func.func @transform_3(%arg0: i32) -> (i32, i32) {
    %c0_i32 = arith.constant 0 : i32
    %c0_i32_0 = arith.constant 0 : i32
    %c0_i32_1 = arith.constant 0 : i32
    return %c0_i32, %c0_i32_0 : i32, i32
  }
  func.func @transform_4(%arg0: i32) -> (i32, i32) {
    %c0_i32 = arith.constant 0 : i32
    %c0_i32_0 = arith.constant 0 : i32
    %c0_i32_1 = arith.constant 0 : i32
    return %c0_i32, %c0_i32_0 : i32, i32
  }
  func.func @transform_5(%arg0: i32) -> (i32, i32) {
    %c0_i32 = arith.constant 0 : i32
    %c0_i32_0 = arith.constant 0 : i32
    %c0_i32_1 = arith.constant 0 : i32
    return %c0_i32, %c0_i32_0 : i32, i32
  }
  func.func @transform_6(%arg0: i32) -> (i32, i32) {
    %c0_i32 = arith.constant 0 : i32
    %c0_i32_0 = arith.constant 0 : i32
    %c0_i32_1 = arith.constant 0 : i32
    return %c0_i32, %c0_i32_0 : i32, i32
  }
  func.func @transform_7(%arg0: i32) -> (i32, i32) {
    %c0_i32 = arith.constant 0 : i32
    %c0_i32_0 = arith.constant 0 : i32
    %c0_i32_1 = arith.constant 0 : i32
    return %c0_i32, %c0_i32_0 : i32, i32
  }
  func.func @transform_8(%arg0: i32) -> (i32, i32) {
    %c0_i32 = arith.constant 0 : i32
    %c0_i32_0 = arith.constant 0 : i32
    %c0_i32_1 = arith.constant 0 : i32
    return %c0_i32, %c0_i32_0 : i32, i32
  }
  func.func @transform_9(%arg0: i32) -> (i32, i32) {
    %c0_i32 = arith.constant 0 : i32
    %c0_i32_0 = arith.constant 0 : i32
    %c0_i32_1 = arith.constant 0 : i32
    return %c0_i32, %c0_i32_0 : i32, i32
  }
  func.func @transform_10(%arg0: i32) -> (i32, i32) {
    %c0_i32 = arith.constant 0 : i32
    %c0_i32_0 = arith.constant 0 : i32
    %c0_i32_1 = arith.constant 0 : i32
    return %c0_i32, %c0_i32_0 : i32, i32
  }
  func.func @transform_11(%arg0: i32) -> (i32, i32) {
    %c0_i32 = arith.constant 0 : i32
    %c0_i32_0 = arith.constant 0 : i32
    %c0_i32_1 = arith.constant 0 : i32
    return %c0_i32, %c0_i32_0 : i32, i32
  }
  func.func @transform_12(%arg0: i32) -> (i32, i32) {
    %c0_i32 = arith.constant 0 : i32
    %c0_i32_0 = arith.constant 0 : i32
    %c0_i32_1 = arith.constant 0 : i32
    return %c0_i32, %c0_i32_0 : i32, i32
  }
  func.func @transform_13(%arg0: i32) -> (i32, i32) {
    %c0_i32 = arith.constant 0 : i32
    %c0_i32_0 = arith.constant 0 : i32
    %c0_i32_1 = arith.constant 0 : i32
    return %c0_i32, %c0_i32_0 : i32, i32
  }
  func.func @transform_14(%arg0: i32) -> i32 {
    %c0_i32 = arith.constant 0 : i32
    %c0_i32_0 = arith.constant 0 : i32
    return %c0_i32 : i32
  }
  func.func @transform_15(%arg0: i32) -> (i32, i32) {
    %c0_i32 = arith.constant 0 : i32
    %c0_i32_0 = arith.constant 0 : i32
    return %arg0, %c0_i32 : i32, i32
  }
}

</mosaic_0001>

<llo_original>
// kernel: tpu_custom_call.1
$region0: #{tpu_custom_call.1}
  #allocation0 [shape = 'u32[]', space=smem, size = 0x4, offset = 0x4, fixed_abs, tag = 'smem constant byte address 0x4 - core index']
  #allocation1 [shape = 'u32[144,128]{1,0:T(1,128)}', space=vmem, size = 0x12000, scoped, tag = 'internal scratch']
  #allocation2 [shape = 'f32[1]{0:T(128)S(6)}', space=smem, size = 0x200, scoped, tag = 'scoped memory for tpu_custom_call.1']
  %s0 = inlined_call_operand.hbm [shape: f32[8,8], index: 0, kind: input, shape index: {}]
  %s1 = inlined_call_operand.hbm [shape: bf16[8,32], index: 1, kind: input, shape index: {}]
  %s2 = inlined_call_operand.vmem [shape: f32[1,32], index: 2, kind: input, shape index: {}]
  %s3 = inlined_call_operand.hbm [shape: bf16[32,32], index: 3, kind: input, shape index: {}]
  %s4 = inlined_call_operand.vmem [shape: f32[1,32], index: 4, kind: input, shape index: {}]
  %s5 = inlined_call_operand.vmem [shape: bf16[32,64], index: 5, kind: input, shape index: {}]
  %s6 = inlined_call_operand.hbm [shape: f32[1,64], index: 6, kind: input, shape index: {}]
  %s7 = inlined_call_operand.hbm [shape: bf16[32,32], index: 7, kind: input, shape index: {}]
  %s8 = inlined_call_operand.hbm [shape: f32[1,32], index: 8, kind: input, shape index: {}]
  %s9 = inlined_call_operand.vmem [shape: bf16[32,128], index: 9, kind: input, shape index: {}]
  %s10 = inlined_call_operand.vmem [shape: f32[1,128], index: 10, kind: input, shape index: {}]
  %s11 = inlined_call_operand.hbm [shape: bf16[32,32], index: 11, kind: input, shape index: {}]
  %s12 = inlined_call_operand.vmem [shape: f32[1,32], index: 12, kind: input, shape index: {}]
  %s13 = inlined_call_operand.vmem [shape: f32[1,32], index: 13, kind: input, shape index: {}]
  %s14 = inlined_call_operand.<no memory space> [shape: f32[1], index: 14, kind: input, shape index: {}]
  %s15 = inlined_call_operand.hbm [shape: f32[8,128], index: 15, kind: output, shape index: {}]
  %s16 = sld [smem:[#allocation0]]
  $region98: #{tpu_custom_call.1} parent=0
    _
  %s18 = ssub.s32 1, %s16
  %s19 = scalar_select 0, %s18, %s16
  %20 = sst [smem:[#allocation2]] %s14
  $region1: #{tpu_custom_call.1} parent=0
    #allocation3 [shape = 'u8[4096]{0}', space=vmem, size = 0x1000, scoped, tag = 'input window, operand 0, single buffered']
    #allocation4 [shape = 's32[1]{0}', space=sflag, size = 0x4, scoped, tag = 'scoped memory for tpu_custom_call.1']
    #allocation5 [shape = 's32[1]{0}', space=sflag, size = 0x4, scoped, tag = 'scoped memory for tpu_custom_call.1']
    #allocation6 [shape = 'u8[2048]{0}', space=vmem, size = 0x800, scoped, tag = 'input window, operand 1, single buffered']
    #allocation7 [shape = 's32[1]{0}', space=sflag, size = 0x4, scoped, tag = 'scoped memory for tpu_custom_call.1']
    #allocation8 [shape = 'u8[8192]{0}', space=vmem, size = 0x2000, scoped, tag = 'input window, operand 3, single buffered']
    #allocation9 [shape = 'u8[512]{0}', space=vmem, size = 0x400, scoped, tag = 'input window, operand 6, single buffered']
    #allocation10 [shape = 's32[1]{0}', space=sflag, size = 0x4, scoped, tag = 'scoped memory for tpu_custom_call.1']
    #allocation11 [shape = 'u8[8192]{0}', space=vmem, size = 0x2000, scoped, tag = 'input window, operand 7, single buffered']
    #allocation12 [shape = 'u8[512]{0}', space=vmem, size = 0x400, scoped, tag = 'input window, operand 8, single buffered']
    #allocation13 [shape = 's32[1]{0}', space=sflag, size = 0x4, scoped, tag = 'scoped memory for tpu_custom_call.1']
    #allocation14 [shape = 'u8[8192]{0}', space=vmem, size = 0x2000, scoped, tag = 'input window, operand 11, single buffered']
    #allocation15 [shape = 'u8[4096]{0}', space=vmem, size = 0x1000, scoped, tag = 'output window, operand 0, single buffered']
    %21 = vsyncpa [#allocation4], 0
    %22 = vsyncpa [#allocation7], 0
    %23 = vsyncpa [#allocation10], 0
    %24 = vsyncpa [#allocation13], 0
    %25 = vsyncpa [#allocation5], 0
    // Predicated region
    $region2: #{tpu_custom_call.1} parent=1 // pred_check
      _
    $region3: #{tpu_custom_call.1} parent=1 // pred_check_branch
      %27 = sbr.rel (0) target = $region5
    $region4: #{tpu_custom_call.1} parent=1 // pred_region
      %s29 = ssub.s32 128, 128
      %30 = vsyncadd [#allocation4], %s29
      %s32 = sshll.u32 [#allocation3], 4
      %s33 = int_to_ptr.vmem [resolvable:$true] %s32
      %35 = dma.hbm_to_vmem [thread:$0]  %s0, 128, %s33, [#allocation4]
    $region5: #{tpu_custom_call.1} parent=1 // pred_fallthru
      _
    // Predicated region
    $region6: #{tpu_custom_call.1} parent=1 // pred_check
      _
    $region7: #{tpu_custom_call.1} parent=1 // pred_check_branch
      %37 = sbr.rel (0) target = $region9
    $region8: #{tpu_custom_call.1} parent=1 // pred_region
      %s39 = ssub.s32 64, 64
      %40 = vsyncadd [#allocation7], %s39
      %s42 = sshll.u32 [#allocation6], 4
      %s43 = int_to_ptr.vmem [resolvable:$true] %s42
      %45 = dma.hbm_to_vmem [thread:$0]  %s1, 64, %s43, [#allocation7]
    $region9: #{tpu_custom_call.1} parent=1 // pred_fallthru
      _
    // Predicated region
    $region10: #{tpu_custom_call.1} parent=1 // pred_check
      _
    $region11: #{tpu_custom_call.1} parent=1 // pred_check_branch
      %47 = sbr.rel (0) target = $region13
    $region12: #{tpu_custom_call.1} parent=1 // pred_region
      _
    $region13: #{tpu_custom_call.1} parent=1 // pred_fallthru
      _
    // Predicated region
    $region14: #{tpu_custom_call.1} parent=1 // pred_check
      _
    $region15: #{tpu_custom_call.1} parent=1 // pred_check_branch
      %49 = sbr.rel (0) target = $region17
    $region16: #{tpu_custom_call.1} parent=1 // pred_region
      %s51 = ssub.s32 256, 256
      %52 = vsyncadd [#allocation7], %s51
      %s53 = sshll.u32 [#allocation8], 4
      %s54 = int_to_ptr.vmem [resolvable:$true] %s53
      %59 = dma.hbm_to_vmem [thread:$0]  %s3, 256, %s54, [#allocation7], 64, 64, 4
    $region17: #{tpu_custom_call.1} parent=1 // pred_fallthru
      _
    // Predicated region
    $region18: #{tpu_custom_call.1} parent=1 // pred_check
      _
    $region19: #{tpu_custom_call.1} parent=1 // pred_check_branch
      %61 = sbr.rel (0) target = $region21
    $region20: #{tpu_custom_call.1} parent=1 // pred_region
      _
    $region21: #{tpu_custom_call.1} parent=1 // pred_fallthru
      _
    // Predicated region
    $region22: #{tpu_custom_call.1} parent=1 // pred_check
      _
    $region23: #{tpu_custom_call.1} parent=1 // pred_check_branch
      %63 = sbr.rel (0) target = $region25
    $region24: #{tpu_custom_call.1} parent=1 // pred_region
      _
    $region25: #{tpu_custom_call.1} parent=1 // pred_fallthru
      _
    // Predicated region
    $region26: #{tpu_custom_call.1} parent=1 // pred_check
      _
    $region27: #{tpu_custom_call.1} parent=1 // pred_check_branch
      %65 = sbr.rel (0) target = $region29
    $region28: #{tpu_custom_call.1} parent=1 // pred_region
      %s67 = ssub.s32 16, 16
      %68 = vsyncadd [#allocation10], %s67
      %s70 = sshll.u32 [#allocation9], 4
      %s71 = int_to_ptr.vmem [resolvable:$true] %s70
      %73 = dma.hbm_to_vmem [thread:$0]  %s6, 16, %s71, [#allocation10]
    $region29: #{tpu_custom_call.1} parent=1 // pred_fallthru
      _
    // Predicated region
    $region30: #{tpu_custom_call.1} parent=1 // pred_check
      _
    $region31: #{tpu_custom_call.1} parent=1 // pred_check_branch
      %75 = sbr.rel (0) target = $region33
    $region32: #{tpu_custom_call.1} parent=1 // pred_region
      %s77 = ssub.s32 256, 256
      %78 = vsyncadd [#allocation10], %s77
      %s79 = sshll.u32 [#allocation11], 4
      %s80 = int_to_ptr.vmem [resolvable:$true] %s79
      %85 = dma.hbm_to_vmem [thread:$0]  %s7, 256, %s80, [#allocation10], 64, 64, 4
    $region33: #{tpu_custom_call.1} parent=1 // pred_fallthru
      _
    // Predicated region
    $region34: #{tpu_custom_call.1} parent=1 // pred_check
      _
    $region35: #{tpu_custom_call.1} parent=1 // pred_check_branch
      %87 = sbr.rel (0) target = $region37
    $region36: #{tpu_custom_call.1} parent=1 // pred_region
      %s89 = ssub.s32 16, 16
      %90 = vsyncadd [#allocation13], %s89
      %s92 = sshll.u32 [#allocation12], 4
      %s93 = int_to_ptr.vmem [resolvable:$true] %s92
      %95 = dma.hbm_to_vmem [thread:$0]  %s8, 16, %s93, [#allocation13]
    $region37: #{tpu_custom_call.1} parent=1 // pred_fallthru
      _
    // Predicated region
    $region38: #{tpu_custom_call.1} parent=1 // pred_check
      _
    $region39: #{tpu_custom_call.1} parent=1 // pred_check_branch
      %97 = sbr.rel (0) target = $region41
    $region40: #{tpu_custom_call.1} parent=1 // pred_region
      _
    $region41: #{tpu_custom_call.1} parent=1 // pred_fallthru
      _
    // Predicated region
    $region42: #{tpu_custom_call.1} parent=1 // pred_check
      _
    $region43: #{tpu_custom_call.1} parent=1 // pred_check_branch
      %99 = sbr.rel (0) target = $region45
    $region44: #{tpu_custom_call.1} parent=1 // pred_region
      _
    $region45: #{tpu_custom_call.1} parent=1 // pred_fallthru
      _
    // Predicated region
    $region46: #{tpu_custom_call.1} parent=1 // pred_check
      _
    $region47: #{tpu_custom_call.1} parent=1 // pred_check_branch
      %101 = sbr.rel (0) target = $region49
    $region48: #{tpu_custom_call.1} parent=1 // pred_region
      %s103 = ssub.s32 256, 256
      %104 = vsyncadd [#allocation13], %s103
      %s105 = sshll.u32 [#allocation14], 4
      %s106 = int_to_ptr.vmem [resolvable:$true] %s105
      %111 = dma.hbm_to_vmem [thread:$0]  %s11, 256, %s106, [#allocation13], 64, 64, 4
    $region49: #{tpu_custom_call.1} parent=1 // pred_fallthru
      _
    // Predicated region
    $region50: #{tpu_custom_call.1} parent=1 // pred_check
      _
    $region51: #{tpu_custom_call.1} parent=1 // pred_check_branch
      %113 = sbr.rel (0) target = $region53
    $region52: #{tpu_custom_call.1} parent=1 // pred_region
      _
    $region53: #{tpu_custom_call.1} parent=1 // pred_fallthru
      _
    // Predicated region
    $region54: #{tpu_custom_call.1} parent=1 // pred_check
      _
    $region55: #{tpu_custom_call.1} parent=1 // pred_check_branch
      %115 = sbr.rel (0) target = $region57
    $region56: #{tpu_custom_call.1} parent=1 // pred_region
      _
    $region57: #{tpu_custom_call.1} parent=1 // pred_fallthru
      _
    // Predicated region
    $region58: #{tpu_custom_call.1} parent=1 // pred_check
      _
    $region59: #{tpu_custom_call.1} parent=1 // pred_check_branch
      %117 = sbr.rel (0) target = $region61
    $region60: #{tpu_custom_call.1} parent=1 // pred_region
      _
    $region61: #{tpu_custom_call.1} parent=1 // pred_fallthru
      _
    // Predicated region
    $region62: #{tpu_custom_call.1} parent=1 // pred_check
      _
    $region63: #{tpu_custom_call.1} parent=1 // pred_check_branch
      %119 = sbr.rel (0) target = $region65
    $region64: #{tpu_custom_call.1} parent=1 // pred_region
      %120 = dma.done [#allocation4], 128
    $region65: #{tpu_custom_call.1} parent=1 // pred_fallthru
      _
    // Predicated region
    $region66: #{tpu_custom_call.1} parent=1 // pred_check
      _
    $region67: #{tpu_custom_call.1} parent=1 // pred_check_branch
      %122 = sbr.rel (0) target = $region69
    $region68: #{tpu_custom_call.1} parent=1 // pred_region
      %123 = dma.done [#allocation7], 64
    $region69: #{tpu_custom_call.1} parent=1 // pred_fallthru
      _
    // Predicated region
    $region70: #{tpu_custom_call.1} parent=1 // pred_check
      _
    $region71: #{tpu_custom_call.1} parent=1 // pred_check_branch
      %125 = sbr.rel (0) target = $region73
    $region72: #{tpu_custom_call.1} parent=1 // pred_region
      %126 = dma.done [#allocation7], 256
    $region73: #{tpu_custom_call.1} parent=1 // pred_fallthru
      _
    // Predicated region
    $region74: #{tpu_custom_call.1} parent=1 // pred_check
      _
    $region75: #{tpu_custom_call.1} parent=1 // pred_check_branch
      %128 = sbr.rel (0) target = $region77
    $region76: #{tpu_custom_call.1} parent=1 // pred_region
      %129 = dma.done [#allocation10], 16
    $region77: #{tpu_custom_call.1} parent=1 // pred_fallthru
      _
    // Predicated region
    $region78: #{tpu_custom_call.1} parent=1 // pred_check
      _
    $region79: #{tpu_custom_call.1} parent=1 // pred_check_branch
      %131 = sbr.rel (0) target = $region81
    $region80: #{tpu_custom_call.1} parent=1 // pred_region
      %132 = dma.done [#allocation10], 256
    $region81: #{tpu_custom_call.1} parent=1 // pred_fallthru
      _
    // Predicated region
    $region82: #{tpu_custom_call.1} parent=1 // pred_check
      _
    $region83: #{tpu_custom_call.1} parent=1 // pred_check_branch
      %134 = sbr.rel (0) target = $region85
    $region84: #{tpu_custom_call.1} parent=1 // pred_region
      %135 = dma.done [#allocation13], 16
    $region85: #{tpu_custom_call.1} parent=1 // pred_fallthru
      _
    // Predicated region
    $region86: #{tpu_custom_call.1} parent=1 // pred_check
      _
    $region87: #{tpu_custom_call.1} parent=1 // pred_check_branch
      %137 = sbr.rel (0) target = $region89
    $region88: #{tpu_custom_call.1} parent=1 // pred_region
      %138 = dma.done [#allocation13], 256
    $region89: #{tpu_custom_call.1} parent=1 // pred_fallthru
      _
    %v140 = vld [vmem:[#allocation3] sm:$0xff]
    %v141 = vpack.c.bf16 %v140, %v140
    %v142 = vld [vmem:[#allocation6] sm:$0xf]
    %v143 = vld [vmem:[%s2] sm:$0x1]
    %v145 = vlaneseq
    %v146 = vshrl.u32 %v145, 7
    %v147 = vsub.s32 0, %v146
    %v148 = vrot.slane %v143, %v147
    %vm150 = vcmask 64512
    %v152 = vsel %vm150, %v141, 0
    %vm154 = vcmask 1043456
    %v156 = vsel %vm154, %v142, 0
    %158 = vmatprep.subr.bf16.mxu0 0
    %159 = vmatpush1.bf16.msra.mxu0 %v156
    %160 = vmatprep.subr.bf16.mxu0 0
    %161 = vmatpush1.bf16.msra.mxu0 0
    %162 = vmatprep.subr.bf16.mxu0 0
    %163 = vmatpush1.bf16.msra.mxu0 0
    %164 = vmatprep.subr.bf16.mxu0 0
    %165 = vmatpush1.bf16.msra.mxu0 0
    %166 = vmatprep.subr.bf16.mxu0 0
    %167 = vmatpush1.bf16.msra.mxu0 0
    %168 = vmatprep.subr.bf16.mxu0 0
    %169 = vmatpush1.bf16.msra.mxu0 0
    %170 = vmatprep.subr.bf16.mxu0 0
    %171 = vmatpush1.bf16.msra.mxu0 0
    %172 = vmatprep.subr.bf16.mxu0 0
    %173 = vmatpush1.bf16.msra.mxu0 0
    %174 = vmatprep.subr.bf16.mxu0 0
    %175 = vmatpush1.bf16.msra.mxu0 0
    %176 = vmatprep.subr.bf16.mxu0 0
    %177 = vmatpush1.bf16.msra.mxu0 0
    %178 = vmatprep.subr.bf16.mxu0 0
    %179 = vmatpush1.bf16.msra.mxu0 0
    %180 = vmatprep.subr.bf16.mxu0 0
    %181 = vmatpush1.bf16.msra.mxu0 0
    %182 = vmatprep.subr.bf16.mxu0 0
    %183 = vmatpush1.bf16.msra.mxu0 0
    %184 = vmatprep.subr.bf16.mxu0 0
    %185 = vmatpush1.bf16.msra.mxu0 0
    %186 = vmatprep.subr.bf16.mxu0 0
    %187 = vmatpush1.bf16.msra.mxu0 0
    %188 = vmatprep.subr.bf16.mxu0 0
    %189 = vmatpush1.bf16.msra.mxu0 0
    %190 = vmatprep.mubr.bf16.mxu0 0
    %191 = vmatmul.mubr.bf16.gmra.mrb[0].mxu0 %v152
    %v192 = vpop.f32.mrb[0].mxu0
    %v193 = vadd.f32 %v148, %v192
    %v194 = vpop.f32.mrb[0].mxu0
    %v195 = vpop.f32.mrb[0].mxu0
    %v196 = vpop.f32.mrb[0].mxu0
    %197 = vdwg.mxu0
    %v198 = vmax.f32 %v193, 0.0
    %v199 = vpack.c.bf16 %v198, %v198
    %v200 = vld [vmem:[#allocation8] sm:$0xf]
    %v201 = vld [vmem:[#allocation8 + $0x4] sm:$0xf]
    %v202 = vld [vmem:[#allocation8 + $0x8] sm:$0xf]
    %v203 = vld [vmem:[#allocation8 + $0xc] sm:$0xf]
    %v204 = vld [vmem:[%s4] sm:$0x1]
    %v206 = vlaneseq
    %v207 = vshrl.u32 %v206, 7
    %v208 = vsub.s32 0, %v207
    %v209 = vrot.slane %v204, %v208
    %v215 = vunpack.c.l.b16 %v200
    %v216 = vunpack.c.l.b16 %v201
    %v217 = vunpack.c.l.b16 %v202
    %v218 = vunpack.c.l.b16 %v203
    %v219 = vpack.c.b16 %v216, %v215
    %v220 = vpack.c.b16 %v218, %v217
    %vm223 = vcmask 261120
    %v225 = vsel %vm223, %v199, 0
    %227 = vmatprep.subr.bf16.mxu0 0
    %228 = vmatpush1.bf16.msra.mxu0 %v219
    %229 = vmatprep.subr.bf16.mxu0 0
    %230 = vmatpush1.bf16.msra.mxu0 %v220
    %231 = vmatprep.subr.bf16.mxu0 0
    %232 = vmatpush1.bf16.msra.mxu0 0
    %233 = vmatprep.subr.bf16.mxu0 0
    %234 = vmatpush1.bf16.msra.mxu0 0
    %235 = vmatprep.subr.bf16.mxu0 0
    %236 = vmatpush1.bf16.msra.mxu0 0
    %237 = vmatprep.subr.bf16.mxu0 0
    %238 = vmatpush1.bf16.msra.mxu0 0
    %239 = vmatprep.subr.bf16.mxu0 0
    %240 = vmatpush1.bf16.msra.mxu0 0
    %241 = vmatprep.subr.bf16.mxu0 0
    %242 = vmatpush1.bf16.msra.mxu0 0
    %243 = vmatprep.subr.bf16.mxu0 0
    %244 = vmatpush1.bf16.msra.mxu0 0
    %245 = vmatprep.subr.bf16.mxu0 0
    %246 = vmatpush1.bf16.msra.mxu0 0
    %247 = vmatprep.subr.bf16.mxu0 0
    %248 = vmatpush1.bf16.msra.mxu0 0
    %249 = vmatprep.subr.bf16.mxu0 0
    %250 = vmatpush1.bf16.msra.mxu0 0
    %251 = vmatprep.subr.bf16.mxu0 0
    %252 = vmatpush1.bf16.msra.mxu0 0
    %253 = vmatprep.subr.bf16.mxu0 0
    %254 = vmatpush1.bf16.msra.mxu0 0
    %255 = vmatprep.subr.bf16.mxu0 0
    %256 = vmatpush1.bf16.msra.mxu0 0
    %257 = vmatprep.subr.bf16.mxu0 0
    %258 = vmatpush1.bf16.msra.mxu0 0
    %259 = vmatprep.mubr.bf16.mxu0 0
    %260 = vmatmul.mubr.bf16.gmra.mrb[0].mxu0 %v225
    %v261 = vpop.f32.mrb[0].mxu0
    %v262 = vadd.f32 %v209, %v261
    %v263 = vpop.f32.mrb[0].mxu0
    %v264 = vpop.f32.mrb[0].mxu0
    %v265 = vpop.f32.mrb[0].mxu0
    %266 = vdwg.mxu0
    %v267 = vmax.f32 %v262, 0.0
    %v268 = vpack.c.bf16 %v267, %v267
    %v269 = vld [vmem:[%s5] sm:$0xf]
    %v270 = vld [vmem:[%s5 + $0x4] sm:$0xf]
    %v271 = vld [vmem:[%s5 + $0x8] sm:$0xf]
    %v272 = vld [vmem:[%s5 + $0xc] sm:$0xf]
    %v273 = vld [vmem:[#allocation9] sm:$0x1]
    %v275 = vlaneseq
    %v276 = vshrl.u32 %v275, 7
    %v277 = vsub.s32 0, %v276
    %v278 = vrot.slane %v273, %v277
    %v284 = vunpack.c.l.b16 %v269
    %v285 = vunpack.c.l.b16 %v270
    %v286 = vunpack.c.l.b16 %v271
    %v287 = vunpack.c.l.b16 %v272
    %v288 = vpack.c.b16 %v285, %v284
    %v289 = vpack.c.b16 %v287, %v286
    %v293 = vsel %vm223, %v268, 0
    %295 = vmatprep.subr.bf16.mxu0 0
    %296 = vmatpush1.bf16.msra.mxu0 %v288
    %297 = vmatprep.subr.bf16.mxu0 0
    %298 = vmatpush1.bf16.msra.mxu0 %v289
    %299 = vmatprep.subr.bf16.mxu0 0
    %300 = vmatpush1.bf16.msra.mxu0 0
    %301 = vmatprep.subr.bf16.mxu0 0
    %302 = vmatpush1.bf16.msra.mxu0 0
    %303 = vmatprep.subr.bf16.mxu0 0
    %304 = vmatpush1.bf16.msra.mxu0 0
    %305 = vmatprep.subr.bf16.mxu0 0
    %306 = vmatpush1.bf16.msra.mxu0 0
    %307 = vmatprep.subr.bf16.mxu0 0
    %308 = vmatpush1.bf16.msra.mxu0 0
    %309 = vmatprep.subr.bf16.mxu0 0
    %310 = vmatpush1.bf16.msra.mxu0 0
    %311 = vmatprep.subr.bf16.mxu0 0
    %312 = vmatpush1.bf16.msra.mxu0 0
    %313 = vmatprep.subr.bf16.mxu0 0
    %314 = vmatpush1.bf16.msra.mxu0 0
    %315 = vmatprep.subr.bf16.mxu0 0
    %316 = vmatpush1.bf16.msra.mxu0 0
    %317 = vmatprep.subr.bf16.mxu0 0
    %318 = vmatpush1.bf16.msra.mxu0 0
    %319 = vmatprep.subr.bf16.mxu0 0
    %320 = vmatpush1.bf16.msra.mxu0 0
    %321 = vmatprep.subr.bf16.mxu0 0
    %322 = vmatpush1.bf16.msra.mxu0 0
    %323 = vmatprep.subr.bf16.mxu0 0
    %324 = vmatpush1.bf16.msra.mxu0 0
    %325 = vmatprep.subr.bf16.mxu0 0
    %326 = vmatpush1.bf16.msra.mxu0 0
    %327 = vmatprep.mubr.bf16.mxu0 0
    %328 = vmatmul.mubr.bf16.gmra.mrb[0].mxu0 %v293
    %v329 = vpop.f32.mrb[0].mxu0
    %v330 = vadd.f32 %v278, %v329
    %v331 = vpop.f32.mrb[0].mxu0
    %v332 = vpop.f32.mrb[0].mxu0
    %v333 = vpop.f32.mrb[0].mxu0
    %334 = vdwg.mxu0
    %v335 = vmax.f32 %v330, 0.0
    %v336 = vpack.c.bf16 %v335, %v335
    %v337 = vld [vmem:[#allocation11] sm:$0xf]
    %v338 = vld [vmem:[#allocation11 + $0x4] sm:$0xf]
    %v339 = vld [vmem:[#allocation11 + $0x8] sm:$0xf]
    %v340 = vld [vmem:[#allocation11 + $0xc] sm:$0xf]
    %v341 = vld [vmem:[#allocation12] sm:$0x1]
    %v343 = vlaneseq
    %v344 = vshrl.u32 %v343, 7
    %v345 = vsub.s32 0, %v344
    %v346 = vrot.slane %v341, %v345
    %v352 = vunpack.c.l.b16 %v337
    %v353 = vunpack.c.l.b16 %v338
    %v354 = vunpack.c.l.b16 %v339
    %v355 = vunpack.c.l.b16 %v340
    %v356 = vpack.c.b16 %v353, %v352
    %v357 = vpack.c.b16 %v355, %v354
    %v361 = vsel %vm223, %v336, 0
    %363 = vmatprep.subr.bf16.mxu0 0
    %364 = vmatpush1.bf16.msra.mxu0 %v356
    %365 = vmatprep.subr.bf16.mxu0 0
    %366 = vmatpush1.bf16.msra.mxu0 %v357
    %367 = vmatprep.subr.bf16.mxu0 0
    %368 = vmatpush1.bf16.msra.mxu0 0
    %369 = vmatprep.subr.bf16.mxu0 0
    %370 = vmatpush1.bf16.msra.mxu0 0
    %371 = vmatprep.subr.bf16.mxu0 0
    %372 = vmatpush1.bf16.msra.mxu0 0
    %373 = vmatprep.subr.bf16.mxu0 0
    %374 = vmatpush1.bf16.msra.mxu0 0
    %375 = vmatprep.subr.bf16.mxu0 0
    %376 = vmatpush1.bf16.msra.mxu0 0
    %377 = vmatprep.subr.bf16.mxu0 0
    %378 = vmatpush1.bf16.msra.mxu0 0
    %379 = vmatprep.subr.bf16.mxu0 0
    %380 = vmatpush1.bf16.msra.mxu0 0
    %381 = vmatprep.subr.bf16.mxu0 0
    %382 = vmatpush1.bf16.msra.mxu0 0
    %383 = vmatprep.subr.bf16.mxu0 0
    %384 = vmatpush1.bf16.msra.mxu0 0
    %385 = vmatprep.subr.bf16.mxu0 0
    %386 = vmatpush1.bf16.msra.mxu0 0
    %387 = vmatprep.subr.bf16.mxu0 0
    %388 = vmatpush1.bf16.msra.mxu0 0
    %389 = vmatprep.subr.bf16.mxu0 0
    %390 = vmatpush1.bf16.msra.mxu0 0
    %391 = vmatprep.subr.bf16.mxu0 0
    %392 = vmatpush1.bf16.msra.mxu0 0
    %393 = vmatprep.subr.bf16.mxu0 0
    %394 = vmatpush1.bf16.msra.mxu0 0
    %395 = vmatprep.mubr.bf16.mxu0 0
    %396 = vmatmul.mubr.bf16.gmra.mrb[0].mxu0 %v361
    %v397 = vpop.f32.mrb[0].mxu0
    %v398 = vadd.f32 %v346, %v397
    %v399 = vpop.f32.mrb[0].mxu0
    %v400 = vpop.f32.mrb[0].mxu0
    %v401 = vpop.f32.mrb[0].mxu0
    %402 = vdwg.mxu0
    %v403 = vmax.f32 %v398, 0.0
    %v404 = vld [vmem:[#allocation14] sm:$0xf]
    %v405 = vld [vmem:[#allocation14 + $0x4] sm:$0xf]
    %v406 = vld [vmem:[#allocation14 + $0x8] sm:$0xf]
    %v407 = vld [vmem:[#allocation14 + $0xc] sm:$0xf]
    %v408 = vld [vmem:[%s12] sm:$0x1]
    %v410 = vlaneseq
    %v411 = vshrl.u32 %v410, 7
    %v412 = vsub.s32 0, %v411
    %v413 = vrot.slane %v408, %v412
    %416 = vrot.lane.b32.xlu0 %v336, 96
    %v417 = vpop.permute.xlu0 %416
    %v422 = vunpack.c.l.b16 %v404
    %v423 = vunpack.c.l.b16 %v405
    %v424 = vunpack.c.l.b16 %v406
    %v425 = vunpack.c.l.b16 %v407
    %v426 = vpack.c.b16 %v423, %v422
    %v427 = vpack.c.b16 %v425, %v424
    %v431 = vsel %vm223, %v417, 0
    %433 = vmatprep.subr.bf16.mxu0 0
    %434 = vmatpush1.bf16.msra.mxu0 %v426
    %435 = vmatprep.subr.bf16.mxu0 0
    %436 = vmatpush1.bf16.msra.mxu0 %v427
    %437 = vmatprep.subr.bf16.mxu0 0
    %438 = vmatpush1.bf16.msra.mxu0 0
    %439 = vmatprep.subr.bf16.mxu0 0
    %440 = vmatpush1.bf16.msra.mxu0 0
    %441 = vmatprep.subr.bf16.mxu0 0
    %442 = vmatpush1.bf16.msra.mxu0 0
    %443 = vmatprep.subr.bf16.mxu0 0
    %444 = vmatpush1.bf16.msra.mxu0 0
    %445 = vmatprep.subr.bf16.mxu0 0
    %446 = vmatpush1.bf16.msra.mxu0 0
    %447 = vmatprep.subr.bf16.mxu0 0
    %448 = vmatpush1.bf16.msra.mxu0 0
    %449 = vmatprep.subr.bf16.mxu0 0
    %450 = vmatpush1.bf16.msra.mxu0 0
    %451 = vmatprep.subr.bf16.mxu0 0
    %452 = vmatpush1.bf16.msra.mxu0 0
    %453 = vmatprep.subr.bf16.mxu0 0
    %454 = vmatpush1.bf16.msra.mxu0 0
    %455 = vmatprep.subr.bf16.mxu0 0
    %456 = vmatpush1.bf16.msra.mxu0 0
    %457 = vmatprep.subr.bf16.mxu0 0
    %458 = vmatpush1.bf16.msra.mxu0 0
    %459 = vmatprep.subr.bf16.mxu0 0
    %460 = vmatpush1.bf16.msra.mxu0 0
    %461 = vmatprep.subr.bf16.mxu0 0
    %462 = vmatpush1.bf16.msra.mxu0 0
    %463 = vmatprep.subr.bf16.mxu0 0
    %464 = vmatpush1.bf16.msra.mxu0 0
    %465 = vmatprep.mubr.bf16.mxu0 0
    %466 = vmatmul.mubr.bf16.gmra.mrb[0].mxu0 %v431
    %v467 = vpop.f32.mrb[0].mxu0
    %v468 = vadd.f32 %v413, %v467
    %v469 = vpop.f32.mrb[0].mxu0
    %v470 = vpop.f32.mrb[0].mxu0
    %v471 = vpop.f32.mrb[0].mxu0
    %472 = vdwg.mxu0
    %v473 = vmax.f32 %v468, 0.0
    %v474 = vpack.c.bf16 %v403, %v403
    %v475 = vld [vmem:[%s9] sm:$0xf]
    %v476 = vld [vmem:[%s9 + $0x4] sm:$0xf]
    %v477 = vld [vmem:[%s9 + $0x8] sm:$0xf]
    %v478 = vld [vmem:[%s9 + $0xc] sm:$0xf]
    %v479 = vld [vmem:[%s10] sm:$0x1]
    %v481 = vlaneseq
    %v482 = vshrl.u32 %v481, 7
    %v483 = vsub.s32 0, %v482
    %v484 = vrot.slane %v479, %v483
    %v490 = vunpack.c.l.b16 %v475
    %v491 = vunpack.c.l.b16 %v476
    %v492 = vunpack.c.l.b16 %v477
    %v493 = vunpack.c.l.b16 %v478
    %v494 = vpack.c.b16 %v491, %v490
    %v495 = vpack.c.b16 %v493, %v492
    %v499 = vsel %vm223, %v474, 0
    %501 = vmatprep.subr.bf16.mxu0 0
    %502 = vmatpush1.bf16.msra.mxu0 %v494
    %503 = vmatprep.subr.bf16.mxu0 0
    %504 = vmatpush1.bf16.msra.mxu0 %v495
    %505 = vmatprep.subr.bf16.mxu0 0
    %506 = vmatpush1.bf16.msra.mxu0 0
    %507 = vmatprep.subr.bf16.mxu0 0
    %508 = vmatpush1.bf16.msra.mxu0 0
    %509 = vmatprep.subr.bf16.mxu0 0
    %510 = vmatpush1.bf16.msra.mxu0 0
    %511 = vmatprep.subr.bf16.mxu0 0
    %512 = vmatpush1.bf16.msra.mxu0 0
    %513 = vmatprep.subr.bf16.mxu0 0
    %514 = vmatpush1.bf16.msra.mxu0 0
    %515 = vmatprep.subr.bf16.mxu0 0
    %516 = vmatpush1.bf16.msra.mxu0 0
    %517 = vmatprep.subr.bf16.mxu0 0
    %518 = vmatpush1.bf16.msra.mxu0 0
    %519 = vmatprep.subr.bf16.mxu0 0
    %520 = vmatpush1.bf16.msra.mxu0 0
    %521 = vmatprep.subr.bf16.mxu0 0
    %522 = vmatpush1.bf16.msra.mxu0 0
    %523 = vmatprep.subr.bf16.mxu0 0
    %524 = vmatpush1.bf16.msra.mxu0 0
    %525 = vmatprep.subr.bf16.mxu0 0
    %526 = vmatpush1.bf16.msra.mxu0 0
    %527 = vmatprep.subr.bf16.mxu0 0
    %528 = vmatpush1.bf16.msra.mxu0 0
    %529 = vmatprep.subr.bf16.mxu0 0
    %530 = vmatpush1.bf16.msra.mxu0 0
    %531 = vmatprep.subr.bf16.mxu0 0
    %532 = vmatpush1.bf16.msra.mxu0 0
    %533 = vmatprep.mubr.bf16.mxu0 0
    %534 = vmatmul.mubr.bf16.gmra.mrb[0].mxu0 %v499
    %v535 = vpop.f32.mrb[0].mxu0
    %v536 = vadd.f32 %v484, %v535
    %v537 = vpop.f32.mrb[0].mxu0
    %v538 = vpop.f32.mrb[0].mxu0
    %v539 = vpop.f32.mrb[0].mxu0
    %540 = vdwg.mxu0
    %v541 = vld [vmem:[%s13] sm:$0x1]
    %v543 = vlaneseq
    %v544 = vshrl.u32 %v543, 7
    %v545 = vsub.s32 0, %v544
    %v546 = vrot.slane %v541, %v545
    %v548 = vmul.f32 %v473, %v546
    %v549 = vsel %vm223, %v548, 0.0
    %550 = vadd.xlane.f32.xlu0 %v549
    %v551 = vpop.xlane.xlu0 %550
    %s552 = sld [smem:[#allocation2]]
    %v553 = vstv %s552
    %v554 = vadd.f32 %v551, %v553
    %v555 = vlaneseq
    %v556 = vand.u32 %v555, 127
    %vm557 = vcmp.eq.s32.totalorder %v556, 4
    %v558 = vsel %vm557, 1, 0
    %v559 = vcvt.s32.f32 %v558
    %v560 = vmul.f32 %v554, %v559
    %v561 = vadd.f32 %v536, %v560
    %562 = vst [vmem:[#allocation15] sm:$0xff] %v561
    // Predicated region
    $region90: #{tpu_custom_call.1} parent=1 // pred_check
      _
    $region91: #{tpu_custom_call.1} parent=1 // pred_check_branch
      %564 = sbr.rel (0) target = $region93
    $region92: #{tpu_custom_call.1} parent=1 // pred_region
      %s566 = ssub.s32 128, 128
      %567 = vsyncadd [#allocation5], %s566
      %s569 = sshll.u32 [#allocation15], 4
      %s570 = int_to_ptr.vmem [resolvable:$true] %s569
      %572 = dma.vmem_to_hbm [thread:$0]  %s570, 128, %s15, [#allocation5]
    $region93: #{tpu_custom_call.1} parent=1 // pred_fallthru
      _
    // Predicated region
    $region94: #{tpu_custom_call.1} parent=1 // pred_check
      _
    $region95: #{tpu_custom_call.1} parent=1 // pred_check_branch
      %574 = sbr.rel (0) target = $region97
    $region96: #{tpu_custom_call.1} parent=1 // pred_region
      %575 = dma.done [#allocation5], 128
    $region97: #{tpu_custom_call.1} parent=1 // pred_fallthru
      _
    %576 = vsyncpa [#allocation4], 1
    %577 = vsyncpa [#allocation7], 1
    %578 = vsyncpa [#allocation10], 1
    %579 = vsyncpa [#allocation13], 1
    %580 = vsyncpa [#allocation5], 1

// kernel: tpu_custom_call.1
$region0: #{tpu_custom_call.1}
  #allocation0 [shape = 'u32[]', space=smem, size = 0x4, offset = 0x4, fixed_abs, tag = 'smem constant byte address 0x4 - core index']
  #allocation1 [shape = 'u32[144,128]{1,0:T(1,128)}', space=vmem, size = 0x12000, scoped, tag = 'internal scratch']
  #allocation2 [shape = 'f32[1]{0:T(128)S(6)}', space=smem, size = 0x200, scoped, tag = 'scoped memory for tpu_custom_call.1']
  %s0 = inlined_call_operand.hbm [shape: f32[8,8], index: 0, kind: input, shape index: {}]
  %s1 = inlined_call_operand.hbm [shape: bf16[8,32], index: 1, kind: input, shape index: {}]
  %s2 = inlined_call_operand.vmem [shape: f32[1,32], index: 2, kind: input, shape index: {}]
  %s3 = inlined_call_operand.hbm [shape: bf16[32,32], index: 3, kind: input, shape index: {}]
  %s4 = inlined_call_operand.vmem [shape: f32[1,32], index: 4, kind: input, shape index: {}]
  %s5 = inlined_call_operand.vmem [shape: bf16[32,64], index: 5, kind: input, shape index: {}]
  %s6 = inlined_call_operand.hbm [shape: f32[1,64], index: 6, kind: input, shape index: {}]
  %s7 = inlined_call_operand.hbm [shape: bf16[32,32], index: 7, kind: input, shape index: {}]
  %s8 = inlined_call_operand.hbm [shape: f32[1,32], index: 8, kind: input, shape index: {}]
  %s9 = inlined_call_operand.vmem [shape: bf16[32,128], index: 9, kind: input, shape index: {}]
  %s10 = inlined_call_operand.vmem [shape: f32[1,128], index: 10, kind: input, shape index: {}]
  %s11 = inlined_call_operand.hbm [shape: bf16[32,32], index: 11, kind: input, shape index: {}]
  %s12 = inlined_call_operand.vmem [shape: f32[1,32], index: 12, kind: input, shape index: {}]
  %s13 = inlined_call_operand.vmem [shape: f32[1,32], index: 13, kind: input, shape index: {}]
  %s14 = inlined_call_operand.<no memory space> [shape: f32[1], index: 14, kind: input, shape index: {}]
  %s15 = inlined_call_operand.hbm [shape: f32[8,128], index: 15, kind: output, shape index: {}]
  %s16 = sld [smem:[#allocation0]]
  $region98: #{tpu_custom_call.1} parent=0
    _
  %s18 = ssub.s32 1, %s16
  %s19 = scalar_select 0, %s18, %s16
  %20 = sst [smem:[#allocation2]] %s14
  $region1: #{tpu_custom_call.1} parent=0
    #allocation3 [shape = 'u8[4096]{0}', space=vmem, size = 0x1000, scoped, tag = 'input window, operand 0, single buffered']
    #allocation4 [shape = 's32[1]{0}', space=sflag, size = 0x4, scoped, tag = 'scoped memory for tpu_custom_call.1']
    #allocation5 [shape = 's32[1]{0}', space=sflag, size = 0x4, scoped, tag = 'scoped memory for tpu_custom_call.1']
    #allocation6 [shape = 'u8[2048]{0}', space=vmem, size = 0x800, scoped, tag = 'input window, operand 1, single buffered']
    #allocation7 [shape = 's32[1]{0}', space=sflag, size = 0x4, scoped, tag = 'scoped memory for tpu_custom_call.1']
    #allocation8 [shape = 'u8[8192]{0}', space=vmem, size = 0x2000, scoped, tag = 'input window, operand 3, single buffered']
    #allocation9 [shape = 'u8[512]{0}', space=vmem, size = 0x400, scoped, tag = 'input window, operand 6, single buffered']
    #allocation10 [shape = 's32[1]{0}', space=sflag, size = 0x4, scoped, tag = 'scoped memory for tpu_custom_call.1']
    #allocation11 [shape = 'u8[8192]{0}', space=vmem, size = 0x2000, scoped, tag = 'input window, operand 7, single buffered']
    #allocation12 [shape = 'u8[512]{0}', space=vmem, size = 0x400, scoped, tag = 'input window, operand 8, single buffered']
    #allocation13 [shape = 's32[1]{0}', space=sflag, size = 0x4, scoped, tag = 'scoped memory for tpu_custom_call.1']
    #allocation14 [shape = 'u8[8192]{0}', space=vmem, size = 0x2000, scoped, tag = 'input window, operand 11, single buffered']
    #allocation15 [shape = 'u8[4096]{0}', space=vmem, size = 0x1000, scoped, tag = 'output window, operand 0, single buffered']
    %21 = vsyncpa [#allocation4], 0
    %22 = vsyncpa [#allocation7], 0
    %23 = vsyncpa [#allocation10], 0
    %24 = vsyncpa [#allocation13], 0
    %25 = vsyncpa [#allocation5], 0
    // Predicated region
    $region2: #{tpu_custom_call.1} parent=1 // pred_check
      _
    $region3: #{tpu_custom_call.1} parent=1 // pred_check_branch
      %27 = sbr.rel (0) target = $region5
    $region4: #{tpu_custom_call.1} parent=1 // pred_region
      %s29 = ssub.s32 128, 128
      %30 = vsyncadd [#allocation4], %s29
      %s32 = sshll.u32 [#allocation3], 4
      %s33 = int_to_ptr.vmem [resolvable:$true] %s32
      %35 = dma.hbm_to_vmem [thread:$0]  %s0, 128, %s33, [#allocation4]
    $region5: #{tpu_custom_call.1} parent=1 // pred_fallthru
      _
    // Predicated region
    $region6: #{tpu_custom_call.1} parent=1 // pred_check
      _
    $region7: #{tpu_custom_call.1} parent=1 // pred_check_branch
      %37 = sbr.rel (0) target = $region9
    $region8: #{tpu_custom_call.1} parent=1 // pred_region
      %s39 = ssub.s32 64, 64
      %40 = vsyncadd [#allocation7], %s39
      %s42 = sshll.u32 [#allocation6], 4
      %s43 = int_to_ptr.vmem [resolvable:$true] %s42
      %45 = dma.hbm_to_vmem [thread:$0]  %s1, 64, %s43, [#allocation7]
    $region9: #{tpu_custom_call.1} parent=1 // pred_fallthru
      _
    // Predicated region
    $region10: #{tpu_custom_call.1} parent=1 // pred_check
      _
    $region11: #{tpu_custom_call.1} parent=1 // pred_check_branch
      %47 = sbr.rel (0) target = $region13
    $region12: #{tpu_custom_call.1} parent=1 // pred_region
      _
    $region13: #{tpu_custom_call.1} parent=1 // pred_fallthru
      _
    // Predicated region
    $region14: #{tpu_custom_call.1} parent=1 // pred_check
      _
    $region15: #{tpu_custom_call.1} parent=1 // pred_check_branch
      %49 = sbr.rel (0) target = $region17
    $region16: #{tpu_custom_call.1} parent=1 // pred_region
      %s51 = ssub.s32 256, 256
      %52 = vsyncadd [#allocation7], %s51
      %s53 = sshll.u32 [#allocation8], 4
      %s54 = int_to_ptr.vmem [resolvable:$true] %s53
      %59 = dma.hbm_to_vmem [thread:$0]  %s3, 256, %s54, [#allocation7], 64, 64, 4
    $region17: #{tpu_custom_call.1} parent=1 // pred_fallthru
      _
    // Predicated region
    $region18: #{tpu_custom_call.1} parent=1 // pred_check
      _
    $region19: #{tpu_custom_call.1} parent=1 // pred_check_branch
      %61 = sbr.rel (0) target = $region21
    $region20: #{tpu_custom_call.1} parent=1 // pred_region
      _
    $region21: #{tpu_custom_call.1} parent=1 // pred_fallthru
      _
    // Predicated region
    $region22: #{tpu_custom_call.1} parent=1 // pred_check
      _
    $region23: #{tpu_custom_call.1} parent=1 // pred_check_branch
      %63 = sbr.rel (0) target = $region25
    $region24: #{tpu_custom_call.1} parent=1 // pred_region
      _
    $region25: #{tpu_custom_call.1} parent=1 // pred_fallthru
      _
    // Predicated region
    $region26: #{tpu_custom_call.1} parent=1 // pred_check
      _
    $region27: #{tpu_custom_call.1} parent=1 // pred_check_branch
      %65 = sbr.rel (0) target = $region29
    $region28: #{tpu_custom_call.1} parent=1 // pred_region
      %s67 = ssub.s32 16, 16
      %68 = vsyncadd [#allocation10], %s67
      %s70 = sshll.u32 [#allocation9], 4
      %s71 = int_to_ptr.vmem [resolvable:$true] %s70
      %73 = dma.hbm_to_vmem [thread:$0]  %s6, 16, %s71, [#allocation10]
    $region29: #{tpu_custom_call.1} parent=1 // pred_fallthru
      _
    // Predicated region
    $region30: #{tpu_custom_call.1} parent=1 // pred_check
      _
    $region31: #{tpu_custom_call.1} parent=1 // pred_check_branch
      %75 = sbr.rel (0) target = $region33
    $region32: #{tpu_custom_call.1} parent=1 // pred_region
      %s77 = ssub.s32 256, 256
      %78 = vsyncadd [#allocation10], %s77
      %s79 = sshll.u32 [#allocation11], 4
      %s80 = int_to_ptr.vmem [resolvable:$true] %s79
      %85 = dma.hbm_to_vmem [thread:$0]  %s7, 256, %s80, [#allocation10], 64, 64, 4
    $region33: #{tpu_custom_call.1} parent=1 // pred_fallthru
      _
    // Predicated region
    $region34: #{tpu_custom_call.1} parent=1 // pred_check
      _
    $region35: #{tpu_custom_call.1} parent=1 // pred_check_branch
      %87 = sbr.rel (0) target = $region37
    $region36: #{tpu_custom_call.1} parent=1 // pred_region
      %s89 = ssub.s32 16, 16
      %90 = vsyncadd [#allocation13], %s89
      %s92 = sshll.u32 [#allocation12], 4
      %s93 = int_to_ptr.vmem [resolvable:$true] %s92
      %95 = dma.hbm_to_vmem [thread:$0]  %s8, 16, %s93, [#allocation13]
    $region37: #{tpu_custom_call.1} parent=1 // pred_fallthru
      _
    // Predicated region
    $region38: #{tpu_custom_call.1} parent=1 // pred_check
      _
    $region39: #{tpu_custom_call.1} parent=1 // pred_check_branch
      %97 = sbr.rel (0) target = $region41
    $region40: #{tpu_custom_call.1} parent=1 // pred_region
      _
    $region41: #{tpu_custom_call.1} parent=1 // pred_fallthru
      _
    // Predicated region
    $region42: #{tpu_custom_call.1} parent=1 // pred_check
      _
    $region43: #{tpu_custom_call.1} parent=1 // pred_check_branch
      %99 = sbr.rel (0) target = $region45
    $region44: #{tpu_custom_call.1} parent=1 // pred_region
      _
    $region45: #{tpu_custom_call.1} parent=1 // pred_fallthru
      _
    // Predicated region
    $region46: #{tpu_custom_call.1} parent=1 // pred_check
      _
    $region47: #{tpu_custom_call.1} parent=1 // pred_check_branch
      %101 = sbr.rel (0) target = $region49
    $region48: #{tpu_custom_call.1} parent=1 // pred_region
      %s103 = ssub.s32 256, 256
      %104 = vsyncadd [#allocation13], %s103
      %s105 = sshll.u32 [#allocation14], 4
      %s106 = int_to_ptr.vmem [resolvable:$true] %s105
      %111 = dma.hbm_to_vmem [thread:$0]  %s11, 256, %s106, [#allocation13], 64, 64, 4
    $region49: #{tpu_custom_call.1} parent=1 // pred_fallthru
      _
    // Predicated region
    $region50: #{tpu_custom_call.1} parent=1 // pred_check
      _
    $region51: #{tpu_custom_call.1} parent=1 // pred_check_branch
      %113 = sbr.rel (0) target = $region53
    $region52: #{tpu_custom_call.1} parent=1 // pred_region
      _
    $region53: #{tpu_custom_call.1} parent=1 // pred_fallthru
      _
    // Predicated region
    $region54: #{tpu_custom_call.1} parent=1 // pred_check
      _
    $region55: #{tpu_custom_call.1} parent=1 // pred_check_branch
      %115 = sbr.rel (0) target = $region57
    $region56: #{tpu_custom_call.1} parent=1 // pred_region
      _
    $region57: #{tpu_custom_call.1} parent=1 // pred_fallthru
      _
    // Predicated region
    $region58: #{tpu_custom_call.1} parent=1 // pred_check
      _
    $region59: #{tpu_custom_call.1} parent=1 // pred_check_branch
      %117 = sbr.rel (0) target = $region61
    $region60: #{tpu_custom_call.1} parent=1 // pred_region
      _
    $region61: #{tpu_custom_call.1} parent=1 // pred_fallthru
      _
    // Predicated region
    $region62: #{tpu_custom_call.1} parent=1 // pred_check
      _
    $region63: #{tpu_custom_call.1} parent=1 // pred_check_branch
      %119 = sbr.rel (0) target = $region65
    $region64: #{tpu_custom_call.1} parent=1 // pred_region
      %120 = dma.done [#allocation4], 128
    $region65: #{tpu_custom_call.1} parent=1 // pred_fallthru
      _
    // Predicated region
    $region66: #{tpu_custom_call.1} parent=1 // pred_check
      _
    $region67: #{tpu_custom_call.1} parent=1 // pred_check_branch
      %122 = sbr.rel (0) target = $region69
    $region68: #{tpu_custom_call.1} parent=1 // pred_region
      %123 = dma.done [#allocation7], 64
    $region69: #{tpu_custom_call.1} parent=1 // pred_fallthru
      _
    // Predicated region
    $region70: #{tpu_custom_call.1} parent=1 // pred_check
      _
    $region71: #{tpu_custom_call.1} parent=1 // pred_check_branch
      %125 = sbr.rel (0) target = $region73
    $region72: #{tpu_custom_call.1} parent=1 // pred_region
      %126 = dma.done [#allocation7], 256
    $region73: #{tpu_custom_call.1} parent=1 // pred_fallthru
      _
    // Predicated region
    $region74: #{tpu_custom_call.1} parent=1 // pred_check
      _
    $region75: #{tpu_custom_call.1} parent=1 // pred_check_branch
      %128 = sbr.rel (0) target = $region77
    $region76: #{tpu_custom_call.1} parent=1 // pred_region
      %129 = dma.done [#allocation10], 16
    $region77: #{tpu_custom_call.1} parent=1 // pred_fallthru
      _
    // Predicated region
    $region78: #{tpu_custom_call.1} parent=1 // pred_check
      _
    $region79: #{tpu_custom_call.1} parent=1 // pred_check_branch
      %131 = sbr.rel (0) target = $region81
    $region80: #{tpu_custom_call.1} parent=1 // pred_region
      %132 = dma.done [#allocation10], 256
    $region81: #{tpu_custom_call.1} parent=1 // pred_fallthru
      _
    // Predicated region
    $region82: #{tpu_custom_call.1} parent=1 // pred_check
      _
    $region83: #{tpu_custom_call.1} parent=1 // pred_check_branch
      %134 = sbr.rel (0) target = $region85
    $region84: #{tpu_custom_call.1} parent=1 // pred_region
      %135 = dma.done [#allocation13], 16
    $region85: #{tpu_custom_call.1} parent=1 // pred_fallthru
      _
    // Predicated region
    $region86: #{tpu_custom_call.1} parent=1 // pred_check
      _
    $region87: #{tpu_custom_call.1} parent=1 // pred_check_branch
      %137 = sbr.rel (0) target = $region89
    $region88: #{tpu_custom_call.1} parent=1 // pred_region
      %138 = dma.done [#allocation13], 256
    $region89: #{tpu_custom_call.1} parent=1 // pred_fallthru
      _
    %v140 = vld [vmem:[#allocation3] sm:$0xff]
    %v141 = vpack.c.bf16 %v140, %v140
    %v142 = vld [vmem:[#allocation6] sm:$0xf]
    %v143 = vld [vmem:[%s2] sm:$0x1]
    %v145 = vlaneseq
    %v146 = vshrl.u32 %v145, 7
    %v147 = vsub.s32 0, %v146
    %v148 = vrot.slane %v143, %v147
    %vm150 = vcmask 64512
    %v152 = vsel %vm150, %v141, 0
    %vm154 = vcmask 1043456
    %v156 = vsel %vm154, %v142, 0
    %158 = vmatprep.subr.bf16.mxu0 0
    %159 = vmatpush1.bf16.msra.mxu0 %v156
    %160 = vmatprep.subr.bf16.mxu0 0
    %161 = vmatpush1.bf16.msra.mxu0 0
    %162 = vmatprep.subr.bf16.mxu0 0
    %163 = vmatpush1.bf16.msra.mxu0 0
    %164 = vmatprep.subr.bf16.mxu0 0
    %165 = vmatpush1.bf16.msra.mxu0 0
    %166 = vmatprep.subr.bf16.mxu0 0
    %167 = vmatpush1.bf16.msra.mxu0 0
    %168 = vmatprep.subr.bf16.mxu0 0
    %169 = vmatpush1.bf16.msra.mxu0 0
    %170 = vmatprep.subr.bf16.mxu0 0
    %171 = vmatpush1.bf16.msra.mxu0 0
    %172 = vmatprep.subr.bf16.mxu0 0
    %173 = vmatpush1.bf16.msra.mxu0 0
    %174 = vmatprep.subr.bf16.mxu0 0
    %175 = vmatpush1.bf16.msra.mxu0 0
    %176 = vmatprep.subr.bf16.mxu0 0
    %177 = vmatpush1.bf16.msra.mxu0 0
    %178 = vmatprep.subr.bf16.mxu0 0
    %179 = vmatpush1.bf16.msra.mxu0 0
    %180 = vmatprep.subr.bf16.mxu0 0
    %181 = vmatpush1.bf16.msra.mxu0 0
    %182 = vmatprep.subr.bf16.mxu0 0
    %183 = vmatpush1.bf16.msra.mxu0 0
    %184 = vmatprep.subr.bf16.mxu0 0
    %185 = vmatpush1.bf16.msra.mxu0 0
    %186 = vmatprep.subr.bf16.mxu0 0
    %187 = vmatpush1.bf16.msra.mxu0 0
    %188 = vmatprep.subr.bf16.mxu0 0
    %189 = vmatpush1.bf16.msra.mxu0 0
    %190 = vmatprep.mubr.bf16.mxu0 0
    %191 = vmatmul.mubr.bf16.gmra.mrb[0].mxu0 %v152
    %v192 = vpop.f32.mrb[0].mxu0
    %v193 = vadd.f32 %v148, %v192
    %v194 = vpop.f32.mrb[0].mxu0
    %v195 = vpop.f32.mrb[0].mxu0
    %v196 = vpop.f32.mrb[0].mxu0
    %197 = vdwg.mxu0
    %v198 = vmax.f32 %v193, 0.0
    %v199 = vpack.c.bf16 %v198, %v198
    %v200 = vld [vmem:[#allocation8] sm:$0xf]
    %v201 = vld [vmem:[#allocation8 + $0x4] sm:$0xf]
    %v202 = vld [vmem:[#allocation8 + $0x8] sm:$0xf]
    %v203 = vld [vmem:[#allocation8 + $0xc] sm:$0xf]
    %v204 = vld [vmem:[%s4] sm:$0x1]
    %v206 = vlaneseq
    %v207 = vshrl.u32 %v206, 7
    %v208 = vsub.s32 0, %v207
    %v209 = vrot.slane %v204, %v208
    %v215 = vunpack.c.l.b16 %v200
    %v216 = vunpack.c.l.b16 %v201
    %v217 = vunpack.c.l.b16 %v202
    %v218 = vunpack.c.l.b16 %v203
    %v219 = vpack.c.b16 %v216, %v215
    %v220 = vpack.c.b16 %v218, %v217
    %vm223 = vcmask 261120
    %v225 = vsel %vm223, %v199, 0
    %227 = vmatprep.subr.bf16.mxu0 0
    %228 = vmatpush1.bf16.msra.mxu0 %v219
    %229 = vmatprep.subr.bf16.mxu0 0
    %230 = vmatpush1.bf16.msra.mxu0 %v220
    %231 = vmatprep.subr.bf16.mxu0 0
    %232 = vmatpush1.bf16.msra.mxu0 0
    %233 = vmatprep.subr.bf16.mxu0 0
    %234 = vmatpush1.bf16.msra.mxu0 0
    %235 = vmatprep.subr.bf16.mxu0 0
    %236 = vmatpush1.bf16.msra.mxu0 0
    %237 = vmatprep.subr.bf16.mxu0 0
    %238 = vmatpush1.bf16.msra.mxu0 0
    %239 = vmatprep.subr.bf16.mxu0 0
    %240 = vmatpush1.bf16.msra.mxu0 0
    %241 = vmatprep.subr.bf16.mxu0 0
    %242 = vmatpush1.bf16.msra.mxu0 0
    %243 = vmatprep.subr.bf16.mxu0 0
    %244 = vmatpush1.bf16.msra.mxu0 0
    %245 = vmatprep.subr.bf16.mxu0 0
    %246 = vmatpush1.bf16.msra.mxu0 0
    %247 = vmatprep.subr.bf16.mxu0 0
    %248 = vmatpush1.bf16.msra.mxu0 0
    %249 = vmatprep.subr.bf16.mxu0 0
    %250 = vmatpush1.bf16.msra.mxu0 0
    %251 = vmatprep.subr.bf16.mxu0 0
    %252 = vmatpush1.bf16.msra.mxu0 0
    %253 = vmatprep.subr.bf16.mxu0 0
    %254 = vmatpush1.bf16.msra.mxu0 0
    %255 = vmatprep.subr.bf16.mxu0 0
    %256 = vmatpush1.bf16.msra.mxu0 0
    %257 = vmatprep.subr.bf16.mxu0 0
    %258 = vmatpush1.bf16.msra.mxu0 0
    %259 = vmatprep.mubr.bf16.mxu0 0
    %260 = vmatmul.mubr.bf16.gmra.mrb[0].mxu0 %v225
    %v261 = vpop.f32.mrb[0].mxu0
    %v262 = vadd.f32 %v209, %v261
    %v263 = vpop.f32.mrb[0].mxu0
    %v264 = vpop.f32.mrb[0].mxu0
    %v265 = vpop.f32.mrb[0].mxu0
    %266 = vdwg.mxu0
    %v267 = vmax.f32 %v262, 0.0
    %v268 = vpack.c.bf16 %v267, %v267
    %v269 = vld [vmem:[%s5] sm:$0xf]
    %v270 = vld [vmem:[%s5 + $0x4] sm:$0xf]
    %v271 = vld [vmem:[%s5 + $0x8] sm:$0xf]
    %v272 = vld [vmem:[%s5 + $0xc] sm:$0xf]
    %v273 = vld [vmem:[#allocation9] sm:$0x1]
    %v275 = vlaneseq
    %v276 = vshrl.u32 %v275, 7
    %v277 = vsub.s32 0, %v276
    %v278 = vrot.slane %v273, %v277
    %v284 = vunpack.c.l.b16 %v269
    %v285 = vunpack.c.l.b16 %v270
    %v286 = vunpack.c.l.b16 %v271
    %v287 = vunpack.c.l.b16 %v272
    %v288 = vpack.c.b16 %v285, %v284
    %v289 = vpack.c.b16 %v287, %v286
    %v293 = vsel %vm223, %v268, 0
    %295 = vmatprep.subr.bf16.mxu0 0
    %296 = vmatpush1.bf16.msra.mxu0 %v288
    %297 = vmatprep.subr.bf16.mxu0 0
    %298 = vmatpush1.bf16.msra.mxu0 %v289
    %299 = vmatprep.subr.bf16.mxu0 0
    %300 = vmatpush1.bf16.msra.mxu0 0
    %301 = vmatprep.subr.bf16.mxu0 0
    %302 = vmatpush1.bf16.msra.mxu0 0
    %303 = vmatprep.subr.bf16.mxu0 0
    %304 = vmatpush1.bf16.msra.mxu0 0
    %305 = vmatprep.subr.bf16.mxu0 0
    %306 = vmatpush1.bf16.msra.mxu0 0
    %307 = vmatprep.subr.bf16.mxu0 0
    %308 = vmatpush1.bf16.msra.mxu0 0
    %309 = vmatprep.subr.bf16.mxu0 0
    %310 = vmatpush1.bf16.msra.mxu0 0
    %311 = vmatprep.subr.bf16.mxu0 0
    %312 = vmatpush1.bf16.msra.mxu0 0
    %313 = vmatprep.subr.bf16.mxu0 0
    %314 = vmatpush1.bf16.msra.mxu0 0
    %315 = vmatprep.subr.bf16.mxu0 0
    %316 = vmatpush1.bf16.msra.mxu0 0
    %317 = vmatprep.subr.bf16.mxu0 0
    %318 = vmatpush1.bf16.msra.mxu0 0
    %319 = vmatprep.subr.bf16.mxu0 0
    %320 = vmatpush1.bf16.msra.mxu0 0
    %321 = vmatprep.subr.bf16.mxu0 0
    %322 = vmatpush1.bf16.msra.mxu0 0
    %323 = vmatprep.subr.bf16.mxu0 0
    %324 = vmatpush1.bf16.msra.mxu0 0
    %325 = vmatprep.subr.bf16.mxu0 0
    %326 = vmatpush1.bf16.msra.mxu0 0
    %327 = vmatprep.mubr.bf16.mxu0 0
    %328 = vmatmul.mubr.bf16.gmra.mrb[0].mxu0 %v293
    %v329 = vpop.f32.mrb[0].mxu0
    %v330 = vadd.f32 %v278, %v329
    %v331 = vpop.f32.mrb[0].mxu0
    %v332 = vpop.f32.mrb[0].mxu0
    %v333 = vpop.f32.mrb[0].mxu0
    %334 = vdwg.mxu0
    %v335 = vmax.f32 %v330, 0.0
    %v336 = vpack.c.bf16 %v335, %v335
    %v337 = vld [vmem:[#allocation11] sm:$0xf]
    %v338 = vld [vmem:[#allocation11 + $0x4] sm:$0xf]
    %v339 = vld [vmem:[#allocation11 + $0x8] sm:$0xf]
    %v340 = vld [vmem:[#allocation11 + $0xc] sm:$0xf]
    %v341 = vld [vmem:[#allocation12] sm:$0x1]
    %v343 = vlaneseq
    %v344 = vshrl.u32 %v343, 7
    %v345 = vsub.s32 0, %v344
    %v346 = vrot.slane %v341, %v345
    %v352 = vunpack.c.l.b16 %v337
    %v353 = vunpack.c.l.b16 %v338
    %v354 = vunpack.c.l.b16 %v339
    %v355 = vunpack.c.l.b16 %v340
    %v356 = vpack.c.b16 %v353, %v352
    %v357 = vpack.c.b16 %v355, %v354
    %v361 = vsel %vm223, %v336, 0
    %363 = vmatprep.subr.bf16.mxu0 0
    %364 = vmatpush1.bf16.msra.mxu0 %v356
    %365 = vmatprep.subr.bf16.mxu0 0
    %366 = vmatpush1.bf16.msra.mxu0 %v357
    %367 = vmatprep.subr.bf16.mxu0 0
    %368 = vmatpush1.bf16.msra.mxu0 0
    %369 = vmatprep.subr.bf16.mxu0 0
    %370 = vmatpush1.bf16.msra.mxu0 0
    %371 = vmatprep.subr.bf16.mxu0 0
    %372 = vmatpush1.bf16.msra.mxu0 0
    %373 = vmatprep.subr.bf16.mxu0 0
    %374 = vmatpush1.bf16.msra.mxu0 0
    %375 = vmatprep.subr.bf16.mxu0 0
    %376 = vmatpush1.bf16.msra.mxu0 0
    %377 = vmatprep.subr.bf16.mxu0 0
    %378 = vmatpush1.bf16.msra.mxu0 0
    %379 = vmatprep.subr.bf16.mxu0 0
    %380 = vmatpush1.bf16.msra.mxu0 0
    %381 = vmatprep.subr.bf16.mxu0 0
    %382 = vmatpush1.bf16.msra.mxu0 0
    %383 = vmatprep.subr.bf16.mxu0 0
    %384 = vmatpush1.bf16.msra.mxu0 0
    %385 = vmatprep.subr.bf16.mxu0 0
    %386 = vmatpush1.bf16.msra.mxu0 0
    %387 = vmatprep.subr.bf16.mxu0 0
    %388 = vmatpush1.bf16.msra.mxu0 0
    %389 = vmatprep.subr.bf16.mxu0 0
    %390 = vmatpush1.bf16.msra.mxu0 0
    %391 = vmatprep.subr.bf16.mxu0 0
    %392 = vmatpush1.bf16.msra.mxu0 0
    %393 = vmatprep.subr.bf16.mxu0 0
    %394 = vmatpush1.bf16.msra.mxu0 0
    %395 = vmatprep.mubr.bf16.mxu0 0
    %396 = vmatmul.mubr.bf16.gmra.mrb[0].mxu0 %v361
    %v397 = vpop.f32.mrb[0].mxu0
    %v398 = vadd.f32 %v346, %v397
    %v399 = vpop.f32.mrb[0].mxu0
    %v400 = vpop.f32.mrb[0].mxu0
    %v401 = vpop.f32.mrb[0].mxu0
    %402 = vdwg.mxu0
    %v403 = vmax.f32 %v398, 0.0
    %v404 = vld [vmem:[#allocation14] sm:$0xf]
    %v405 = vld [vmem:[#allocation14 + $0x4] sm:$0xf]
    %v406 = vld [vmem:[#allocation14 + $0x8] sm:$0xf]
    %v407 = vld [vmem:[#allocation14 + $0xc] sm:$0xf]
    %v408 = vld [vmem:[%s12] sm:$0x1]
    %v410 = vlaneseq
    %v411 = vshrl.u32 %v410, 7
    %v412 = vsub.s32 0, %v411
    %v413 = vrot.slane %v408, %v412
    %416 = vrot.lane.b32.xlu0 %v336, 96
    %v417 = vpop.permute.xlu0 %416
    %v422 = vunpack.c.l.b16 %v404
    %v423 = vunpack.c.l.b16 %v405
    %v424 = vunpack.c.l.b16 %v406
    %v425 = vunpack.c.l.b16 %v407
    %v426 = vpack.c.b16 %v423, %v422
    %v427 = vpack.c.b16 %v425, %v424
    %v431 = vsel %vm223, %v417, 0
    %433 = vmatprep.subr.bf16.mxu0 0
    %434 = vmatpush1.bf16.msra.mxu0 %v426
    %435 = vmatprep.subr.bf16.mxu0 0
    %436 = vmatpush1.bf16.msra.mxu0 %v427
    %437 = vmatprep.subr.bf16.mxu0 0
    %438 = vmatpush1.bf16.msra.mxu0 0
    %439 = vmatprep.subr.bf16.mxu0 0
    %440 = vmatpush1.bf16.msra.mxu0 0
    %441 = vmatprep.subr.bf16.mxu0 0
    %442 = vmatpush1.bf16.msra.mxu0 0
    %443 = vmatprep.subr.bf16.mxu0 0
    %444 = vmatpush1.bf16.msra.mxu0 0
    %445 = vmatprep.subr.bf16.mxu0 0
    %446 = vmatpush1.bf16.msra.mxu0 0
    %447 = vmatprep.subr.bf16.mxu0 0
    %448 = vmatpush1.bf16.msra.mxu0 0
    %449 = vmatprep.subr.bf16.mxu0 0
    %450 = vmatpush1.bf16.msra.mxu0 0
    %451 = vmatprep.subr.bf16.mxu0 0
    %452 = vmatpush1.bf16.msra.mxu0 0
    %453 = vmatprep.subr.bf16.mxu0 0
    %454 = vmatpush1.bf16.msra.mxu0 0
    %455 = vmatprep.subr.bf16.mxu0 0
    %456 = vmatpush1.bf16.msra.mxu0 0
    %457 = vmatprep.subr.bf16.mxu0 0
    %458 = vmatpush1.bf16.msra.mxu0 0
    %459 = vmatprep.subr.bf16.mxu0 0
    %460 = vmatpush1.bf16.msra.mxu0 0
    %461 = vmatprep.subr.bf16.mxu0 0
    %462 = vmatpush1.bf16.msra.mxu0 0
    %463 = vmatprep.subr.bf16.mxu0 0
    %464 = vmatpush1.bf16.msra.mxu0 0
    %465 = vmatprep.mubr.bf16.mxu0 0
    %466 = vmatmul.mubr.bf16.gmra.mrb[0].mxu0 %v431
    %v467 = vpop.f32.mrb[0].mxu0
    %v468 = vadd.f32 %v413, %v467
    %v469 = vpop.f32.mrb[0].mxu0
    %v470 = vpop.f32.mrb[0].mxu0
    %v471 = vpop.f32.mrb[0].mxu0
    %472 = vdwg.mxu0
    %v473 = vmax.f32 %v468, 0.0
    %v474 = vpack.c.bf16 %v403, %v403
    %v475 = vld [vmem:[%s9] sm:$0xf]
    %v476 = vld [vmem:[%s9 + $0x4] sm:$0xf]
    %v477 = vld [vmem:[%s9 + $0x8] sm:$0xf]
    %v478 = vld [vmem:[%s9 + $0xc] sm:$0xf]
    %v479 = vld [vmem:[%s10] sm:$0x1]
    %v481 = vlaneseq
    %v482 = vshrl.u32 %v481, 7
    %v483 = vsub.s32 0, %v482
    %v484 = vrot.slane %v479, %v483
    %v490 = vunpack.c.l.b16 %v475
    %v491 = vunpack.c.l.b16 %v476
    %v492 = vunpack.c.l.b16 %v477
    %v493 = vunpack.c.l.b16 %v478
    %v494 = vpack.c.b16 %v491, %v490
    %v495 = vpack.c.b16 %v493, %v492
    %v499 = vsel %vm223, %v474, 0
    %501 = vmatprep.subr.bf16.mxu0 0
    %502 = vmatpush1.bf16.msra.mxu0 %v494
    %503 = vmatprep.subr.bf16.mxu0 0
    %504 = vmatpush1.bf16.msra.mxu0 %v495
    %505 = vmatprep.subr.bf16.mxu0 0
    %506 = vmatpush1.bf16.msra.mxu0 0
    %507 = vmatprep.subr.bf16.mxu0 0
    %508 = vmatpush1.bf16.msra.mxu0 0
    %509 = vmatprep.subr.bf16.mxu0 0
    %510 = vmatpush1.bf16.msra.mxu0 0
    %511 = vmatprep.subr.bf16.mxu0 0
    %512 = vmatpush1.bf16.msra.mxu0 0
    %513 = vmatprep.subr.bf16.mxu0 0
    %514 = vmatpush1.bf16.msra.mxu0 0
    %515 = vmatprep.subr.bf16.mxu0 0
    %516 = vmatpush1.bf16.msra.mxu0 0
    %517 = vmatprep.subr.bf16.mxu0 0
    %518 = vmatpush1.bf16.msra.mxu0 0
    %519 = vmatprep.subr.bf16.mxu0 0
    %520 = vmatpush1.bf16.msra.mxu0 0
    %521 = vmatprep.subr.bf16.mxu0 0
    %522 = vmatpush1.bf16.msra.mxu0 0
    %523 = vmatprep.subr.bf16.mxu0 0
    %524 = vmatpush1.bf16.msra.mxu0 0
    %525 = vmatprep.subr.bf16.mxu0 0
    %526 = vmatpush1.bf16.msra.mxu0 0
    %527 = vmatprep.subr.bf16.mxu0 0
    %528 = vmatpush1.bf16.msra.mxu0 0
    %529 = vmatprep.subr.bf16.mxu0 0
    %530 = vmatpush1.bf16.msra.mxu0 0
    %531 = vmatprep.subr.bf16.mxu0 0
    %532 = vmatpush1.bf16.msra.mxu0 0
    %533 = vmatprep.mubr.bf16.mxu0 0
    %534 = vmatmul.mubr.bf16.gmra.mrb[0].mxu0 %v499
    %v535 = vpop.f32.mrb[0].mxu0
    %v536 = vadd.f32 %v484, %v535
    %v537 = vpop.f32.mrb[0].mxu0
    %v538 = vpop.f32.mrb[0].mxu0
    %v539 = vpop.f32.mrb[0].mxu0
    %540 = vdwg.mxu0
    %v541 = vld [vmem:[%s13] sm:$0x1]
    %v543 = vlaneseq
    %v544 = vshrl.u32 %v543, 7
    %v545 = vsub.s32 0, %v544
    %v546 = vrot.slane %v541, %v545
    %v548 = vmul.f32 %v473, %v546
    %v549 = vsel %vm223, %v548, 0.0
    %550 = vadd.xlane.f32.xlu0 %v549
    %v551 = vpop.xlane.xlu0 %550
    %s552 = sld [smem:[#allocation2]]
    %v553 = vstv %s552
    %v554 = vadd.f32 %v551, %v553
    %v555 = vlaneseq
    %v556 = vand.u32 %v555, 127
    %vm557 = vcmp.eq.s32.totalorder %v556, 4
    %v558 = vsel %vm557, 1, 0
    %v559 = vcvt.s32.f32 %v558
    %v560 = vmul.f32 %v554, %v559
    %v561 = vadd.f32 %v536, %v560
    %562 = vst [vmem:[#allocation15] sm:$0xff] %v561
    // Predicated region
    $region90: #{tpu_custom_call.1} parent=1 // pred_check
      _
    $region91: #{tpu_custom_call.1} parent=1 // pred_check_branch
      %564 = sbr.rel (0) target = $region93
    $region92: #{tpu_custom_call.1} parent=1 // pred_region
      %s566 = ssub.s32 128, 128
      %567 = vsyncadd [#allocation5], %s566
      %s569 = sshll.u32 [#allocation15], 4
      %s570 = int_to_ptr.vmem [resolvable:$true] %s569
      %572 = dma.vmem_to_hbm [thread:$0]  %s570, 128, %s15, [#allocation5]
    $region93: #{tpu_custom_call.1} parent=1 // pred_fallthru
      _
    // Predicated region
    $region94: #{tpu_custom_call.1} parent=1 // pred_check
      _
    $region95: #{tpu_custom_call.1} parent=1 // pred_check_branch
      %574 = sbr.rel (0) target = $region97
    $region96: #{tpu_custom_call.1} parent=1 // pred_region
      %575 = dma.done [#allocation5], 128
    $region97: #{tpu_custom_call.1} parent=1 // pred_fallthru
      _
    %576 = vsyncpa [#allocation4], 1
    %577 = vsyncpa [#allocation7], 1
    %578 = vsyncpa [#allocation10], 1
    %579 = vsyncpa [#allocation13], 1
    %580 = vsyncpa [#allocation5], 1

</llo_original>
